<compile_context>
chip_gen: v7x
topology: tpu7x:2x2x1
jax: 0.10.0
libtpu: 0.0.40
codegen_flags: <defaults>
</compile_context>

<pallas_src>
import functools

import jax
import jax.numpy as jnp
from jax import lax
from jax.experimental import pallas as pl
from jax.experimental.pallas import tpu as pltpu


# ----------------------------- Pallas kernel ------------------------------ #
def _moco_kernel(scale_ref,                                   # SMEM (1,1) f32
                 xq_ref, xk_ref,                              # (TN, D_IN) bf16
                 w1q_ref, b1q_ref, w2q_ref, b2q_ref,          # q-encoder params
                 w1k_ref, b1k_ref, w2k_ref, b2k_ref,          # k-encoder params
                 queue_ref,                                   # (E, TK) bf16
                 k_out_ref,                                   # (TN, E) f32
                 stats_out_ref,                               # (TN, 128) f32
                 q_sc,                                        # (TN, E) bf16
                 lpos_sc, m_sc, l_sc, rank_sc):               # (TN, 1) f32
    kk = pl.program_id(1)
    inv_t = scale_ref[0, 0]

    @pl.when(kk == 0)
    def _init():
        def encode(x, w1, b1, w2, b2):
            # bf16 MXU matmuls, f32 accumulation.
            h = jnp.dot(x, w1[...], preferred_element_type=jnp.float32) + b1[...]
            h = jnp.maximum(h, 0.0)
            z = jnp.dot(h.astype(jnp.bfloat16), w2[...],
                        preferred_element_type=jnp.float32) + b2[...]
            # F.normalize(dim=1): z / max(||z||, 1e-12)  ==  z * rsqrt(max(ssq, 1e-24))
            ssq = jnp.sum(z * z, axis=1, keepdims=True)
            return z * lax.rsqrt(jnp.maximum(ssq, 1e-24))

        q = encode(xq_ref[...], w1q_ref, b1q_ref, w2q_ref, b2q_ref)
        k = encode(xk_ref[...], w1k_ref, b1k_ref, w2k_ref, b2k_ref)
        k_out_ref[...] = k
        q_sc[...] = q.astype(jnp.bfloat16)

        # Positive logit, folded directly into the online softmax state.
        lpos = jnp.sum(q * k, axis=1, keepdims=True) * inv_t
        lpos_sc[...] = lpos
        m_sc[...] = lpos                       # running max
        l_sc[...] = jnp.ones_like(l_sc)        # exp(lpos - m) == 1
        rank_sc[...] = jnp.zeros_like(rank_sc)

    # Negative logits for this queue tile:  (TN, E) @ (E, TK) -> (TN, TK)
    s = jnp.dot(q_sc[...], queue_ref[...],
                preferred_element_type=jnp.float32) * inv_t

    m_prev = m_sc[...]
    m_new = jnp.maximum(m_prev, jnp.max(s, axis=1, keepdims=True))
    alpha = jnp.exp(m_prev - m_new)
    l_sc[...] = alpha * l_sc[...] + jnp.sum(jnp.exp(s - m_new), axis=1,
                                            keepdims=True)
    m_sc[...] = m_new
    # Rank of the positive (strict '>' matches topk with positive at index 0).
    rank_sc[...] = rank_sc[...] + jnp.sum(
        (s > lpos_sc[...]).astype(jnp.float32), axis=1, keepdims=True)

    @pl.when(kk == pl.num_programs(1) - 1)
    def _finalize():
        lse = m_sc[...] + jnp.log(l_sc[...])
        loss_row = lse - lpos_sc[...]                        # CE with label 0
        col = lax.broadcasted_iota(jnp.int32, stats_out_ref.shape, 1)
        stats_out_ref[...] = (jnp.where(col == 0, loss_row, 0.0)
                              + jnp.where(col == 1, rank_sc[...], 0.0))


# ------------------------- pallas_call wrapper ------------------------------ #
def _moco_pallas(xq, xk, params_q, params_k, queue, inv_temp):
    n, d_in = xq.shape
    emb_dim, num_neg = queue.shape
    hidden = params_q["w1"].shape[1]

    # Pad batch rows to a sublane multiple; feature dims must be lane aligned.
    n_pad = max(8, ((n + 7) // 8) * 8)
    tile_n = 128 if (n_pad % 128 == 0) else n_pad
    # Lane tile over the queue.  128 keeps this demo multi-step; at real MoCo
    # scale (K=65536) use ~512 (v5e, 16MiB scoped VMEM) to 1024 (v6e), and
    # re-derive for v7x's 64 MiB physical VMEM.
    tile_k = 128 if (num_neg % 128 == 0) else num_neg
    assert n_pad % tile_n == 0 and num_neg % tile_k == 0
    assert d_in % 128 == 0 and hidden % 128 == 0 and emb_dim % 128 == 0

    def pad_rows(x):
        return jnp.pad(x, ((0, n_pad - n), (0, 0)))

    xq_b = pad_rows(xq).astype(jnp.bfloat16)
    xk_b = pad_rows(xk).astype(jnp.bfloat16)
    queue_b = queue.astype(jnp.bfloat16)
    w1q = params_q["w1"].astype(jnp.bfloat16)
    w2q = params_q["w2"].astype(jnp.bfloat16)
    w1k = params_k["w1"].astype(jnp.bfloat16)
    w2k = params_k["w2"].astype(jnp.bfloat16)
    b1q, b2q = params_q["b1"], params_q["b2"]          # biases stay f32
    b1k, b2k = params_k["b1"], params_k["b2"]
    scale = jnp.reshape(inv_temp, (1, 1)).astype(jnp.float32)

    grid = (n_pad // tile_n, num_neg // tile_k)
    rep = lambda i, k: (0, 0)                            # resident params
    batch_map = lambda i, k: (i, 0)

    k_keys, row_stats = pl.pallas_call(
        _moco_kernel,
        out_shape=(
            jax.ShapeDtypeStruct((n_pad, emb_dim), jnp.float32),   # keys k
            jax.ShapeDtypeStruct((n_pad, 128), jnp.float32),       # per-row stats
        ),
        grid_spec=pltpu.PrefetchScalarGridSpec(
            num_scalar_prefetch=0,
            grid=grid,
            in_specs=[
                pl.BlockSpec(memory_space=pltpu.MemorySpace.SMEM),   # 1/T scalar
                pl.BlockSpec((tile_n, d_in), batch_map),             # xq
                pl.BlockSpec((tile_n, d_in), batch_map),             # xk
                pl.BlockSpec((d_in, hidden), rep),                   # w1q
                pl.BlockSpec((1, hidden), rep),                      # b1q
                pl.BlockSpec((hidden, emb_dim), rep),                # w2q
                pl.BlockSpec((1, emb_dim), rep),                     # b2q
                pl.BlockSpec((d_in, hidden), rep),                   # w1k
                pl.BlockSpec((1, hidden), rep),                      # b1k
                pl.BlockSpec((hidden, emb_dim), rep),                # w2k
                pl.BlockSpec((1, emb_dim), rep),                     # b2k
                pl.BlockSpec((emb_dim, tile_k), lambda i, k: (0, k)),  # queue
            ],
            out_specs=[
                pl.BlockSpec((tile_n, emb_dim), batch_map),
                pl.BlockSpec((tile_n, 128), batch_map),
            ],
            scratch_shapes=[
                pltpu.VMEM((tile_n, emb_dim), jnp.bfloat16),   # q
                pltpu.VMEM((tile_n, 1), jnp.float32),          # l_pos
                pltpu.VMEM((tile_n, 1), jnp.float32),          # running max
                pltpu.VMEM((tile_n, 1), jnp.float32),          # running sum
                pltpu.VMEM((tile_n, 1), jnp.float32),          # rank
            ],
        ),
        compiler_params=pltpu.CompilerParams(
            dimension_semantics=("parallel", "arbitrary"),
            vmem_limit_bytes=32 * 1024 * 1024),
    )(scale, xq_b, xk_b,
      w1q, b1q, w2q, b2q, w1k, b1k, w2k, b2k,
      queue_b)
    return k_keys, row_stats


# ------------------------------- forward ----------------------------------- #
@functools.partial(jax.jit, donate_argnums=(4,))   # queue updated in place
def moco_v2_forward(img_q, img_k, params_q, params_k, queue, queue_ptr,
                    softmax_temperature, encoder_momentum):
    """Reproduces Moco_v2.forward: returns (loss, log, new_state)."""
    # _momentum_update_key_encoder (numerically a no-op since k was copied from q)
    em = encoder_momentum
    params_k = jax.tree_util.tree_map(lambda pk, pq: pk * em + pq * (1.0 - em),
                                      params_k, params_q)

    n = img_q.shape[0]
    emb_dim, num_neg = queue.shape
    xq = img_q.reshape(n, -1).astype(jnp.float32)
    xk = img_k.reshape(n, -1).astype(jnp.float32)

    k_keys, row_stats = _moco_pallas(xq, xk, params_q, params_k, queue,
                                     1.0 / softmax_temperature)

    keys = k_keys[:n]                        # drop padded rows
    loss_rows = row_stats[:n, 0]
    rank = row_stats[:n, 1]
    loss = jnp.mean(loss_rows)
    acc1 = jnp.reshape(jnp.mean((rank < 1.0).astype(jnp.float32)), (1,)) * 100.0
    acc5 = jnp.reshape(jnp.mean((rank < 5.0).astype(jnp.float32)), (1,)) * 100.0

    # _dequeue_and_enqueue: queue[:, ptr:ptr+n] = k.T ; ptr = (ptr + n) % K
    ptr = queue_ptr[0]
    new_queue = lax.dynamic_update_slice(queue, keys.T, (jnp.int32(0), ptr))
    new_ptr = jnp.reshape((ptr + n) % num_neg, (1,)).astype(queue_ptr.dtype)

    log = {"train_loss": loss, "train_acc1": acc1, "train_acc5": acc5}
    new_state = {"queue": new_queue, "queue_ptr": new_ptr, "params_k": params_k}
    return loss, log, new_state


# --------------------------- parameter creation ----------------------------- #
def init_params(key, d_in, hidden, emb_dim):
    k1, k2 = jax.random.split(key)
    return {
        "w1": (jax.random.normal(k1, (d_in, hidden), jnp.float32)
               * (1.0 / jnp.sqrt(d_in))),
        "b1": jnp.zeros((1, hidden), jnp.float32),
        "w2": (jax.random.normal(k2, (hidden, emb_dim), jnp.float32)
               * (1.0 / jnp.sqrt(hidden))),
        "b2": jnp.zeros((1, emb_dim), jnp.float32),
    }


if __name__ == "__main__":
    # Small, module-consistent sizes (emb_dim=128 is the MoCo default; feature
    # dims kept lane aligned).
    N, C, H, W = 2, 4, 16, 16            # batch of NCHW images
    HIDDEN = 128
    EMB_DIM = 128                        # feature dimension (emb_dim)
    NUM_NEG = 512                        # queue size (divisible by batch, by 128)
    D_IN = C * H * W

    root = jax.random.PRNGKey(0)
    k_img_q, k_img_k, k_enc, k_queue = jax.random.split(root, 4)

    img_q = jax.random.normal(k_img_q, (N, C, H, W), jnp.float32)
    img_k = jax.random.normal(k_img_k, (N, C, H, W), jnp.float32)

    params_q = init_params(k_enc, D_IN, HIDDEN, EMB_DIM)
    # encoder_k is a deep copy of encoder_q
    params_k = jax.tree_util.tree_map(lambda x: x, params_q)

    # register_buffer('queue', randn(emb_dim, K)) then normalize along dim 0
    queue = jax.random.normal(k_queue, (EMB_DIM, NUM_NEG), jnp.float32)
    queue = queue * lax.rsqrt(
        jnp.maximum(jnp.sum(queue * queue, axis=0, keepdims=True), 1e-24))
    queue_ptr = jnp.zeros((1,), jnp.int32)

    loss, log, new_state = moco_v2_forward(
        img_q, img_k, params_q, params_k, queue, queue_ptr, 0.07, 0.999)

    jax.block_until_ready((loss, log, new_state))
    print("KERNEL_OK")
</pallas_src>

<mosaic_0001>
module attributes {stable_mosaic.version = 11 : i64} {
  func.func @_moco_kernel(%arg0: i32, %arg1: i32, %arg2: memref<1x1xf32, #tpu.memory_space<smem>>, %arg3: memref<8x1024xbf16, #tpu.memory_space<vmem>>, %arg4: memref<8x1024xbf16, #tpu.memory_space<vmem>>, %arg5: memref<1024x128xbf16, #tpu.memory_space<vmem>>, %arg6: memref<1x128xf32, #tpu.memory_space<vmem>>, %arg7: memref<128x128xbf16, #tpu.memory_space<vmem>>, %arg8: memref<1x128xf32, #tpu.memory_space<vmem>>, %arg9: memref<1024x128xbf16, #tpu.memory_space<vmem>>, %arg10: memref<1x128xf32, #tpu.memory_space<vmem>>, %arg11: memref<128x128xbf16, #tpu.memory_space<vmem>>, %arg12: memref<1x128xf32, #tpu.memory_space<vmem>>, %arg13: memref<128x128xbf16, #tpu.memory_space<vmem>>, %arg14: memref<8x128xf32, #tpu.memory_space<vmem>>, %arg15: memref<8x128xf32, #tpu.memory_space<vmem>>, %arg16: memref<8x128xbf16, #tpu.memory_space<vmem>>, %arg17: memref<8x1xf32, #tpu.memory_space<vmem>>, %arg18: memref<8x1xf32, #tpu.memory_space<vmem>>, %arg19: memref<8x1xf32, #tpu.memory_space<vmem>>, %arg20: memref<8x1xf32, #tpu.memory_space<vmem>>) attributes {dimension_semantics = [#tpu.dimension_semantics<parallel>, #tpu.dimension_semantics<arbitrary>], iteration_bounds = array<i64: 1, 4>, scalar_prefetch = 0 : i64, scratch_operands = 5 : i64, tpu.core_type = #tpu.core_type<tc>, window_params = [{transform_indices = @transform_0, window_bounds = array<i64: 1, 1>}, {transform_indices = @transform_1, window_bounds = array<i64: 8, 1024>}, {transform_indices = @transform_2, window_bounds = array<i64: 8, 1024>}, {pipeline_mode = #tpu.pipeline_mode<synchronous>, transform_indices = @transform_3, window_bounds = array<i64: 1024, 128>}, {pipeline_mode = #tpu.pipeline_mode<synchronous>, transform_indices = @transform_4, window_bounds = array<i64: 1, 128>}, {pipeline_mode = #tpu.pipeline_mode<synchronous>, transform_indices = @transform_5, window_bounds = array<i64: 128, 128>}, {pipeline_mode = #tpu.pipeline_mode<synchronous>, transform_indices = @transform_6, window_bounds = array<i64: 1, 128>}, {pipeline_mode = #tpu.pipeline_mode<synchronous>, transform_indices = @transform_7, window_bounds = array<i64: 1024, 128>}, {pipeline_mode = #tpu.pipeline_mode<synchronous>, transform_indices = @transform_8, window_bounds = array<i64: 1, 128>}, {pipeline_mode = #tpu.pipeline_mode<synchronous>, transform_indices = @transform_9, window_bounds = array<i64: 128, 128>}, {pipeline_mode = #tpu.pipeline_mode<synchronous>, transform_indices = @transform_10, window_bounds = array<i64: 1, 128>}, {transform_indices = @transform_11, window_bounds = array<i64: 128, 128>}, {transform_indices = @transform_12, window_bounds = array<i64: 8, 128>}, {transform_indices = @transform_13, window_bounds = array<i64: 8, 128>}]} {
    %c0 = arith.constant 0 : index
    %c0_0 = arith.constant 0 : index
    %0 = memref.load %arg2[%c0, %c0_0] : memref<1x1xf32, #tpu.memory_space<smem>>
    %c0_i32 = arith.constant 0 : i32
    %1 = arith.cmpi eq, %arg1, %c0_i32 : i32
    %2 = arith.extui %1 : i1 to i32
    %c0_i32_1 = arith.constant 0 : i32
    %3 = arith.cmpi ne, %2, %c0_i32_1 : i32
    scf.if %3 {
      %c0_24 = arith.constant 0 : index
      %c0_25 = arith.constant 0 : index
      %38 = vector.load %arg3[%c0_24, %c0_25] : memref<8x1024xbf16, #tpu.memory_space<vmem>>, vector<8x1024xbf16>
      %c0_26 = arith.constant 0 : index
      %c0_27 = arith.constant 0 : index
      %39 = vector.load %arg5[%c0_26, %c0_27] : memref<1024x128xbf16, #tpu.memory_space<vmem>>, vector<1024x128xbf16>
      %cst_28 = arith.constant dense<0.000000e+00> : vector<8x128xf32>
      %40 = tpu.matmul %38, %39, %cst_28 {dimension_numbers = #tpu.dot_dimension_numbers<[1], [0], [0], [1], [0, 0, 1, 1], [], []>} : vector<8x1024xbf16>, vector<1024x128xbf16>, vector<8x128xf32> -> vector<8x128xf32>
      %c0_29 = arith.constant 0 : index
      %c0_30 = arith.constant 0 : index
      %41 = vector.load %arg6[%c0_29, %c0_30] : memref<1x128xf32, #tpu.memory_space<vmem>>, vector<1x128xf32>
      %42 = vector.broadcast %41 : vector<1x128xf32> to vector<8x128xf32>
      %43 = arith.addf %40, %42 : vector<8x128xf32>
      %cst_31 = arith.constant 0.000000e+00 : f32
      %44 = vector.broadcast %cst_31 : f32 to vector<8x128xf32>
      %45 = arith.maximumf %43, %44 : vector<8x128xf32>
      %46 = arith.truncf %45 : vector<8x128xf32> to vector<8x128xbf16>
      %c0_32 = arith.constant 0 : index
      %c0_33 = arith.constant 0 : index
      %47 = vector.load %arg7[%c0_32, %c0_33] : memref<128x128xbf16, #tpu.memory_space<vmem>>, vector<128x128xbf16>
      %cst_34 = arith.constant dense<0.000000e+00> : vector<8x128xf32>
      %48 = tpu.matmul %46, %47, %cst_34 {dimension_numbers = #tpu.dot_dimension_numbers<[1], [0], [0], [1], [0, 0, 1, 1], [], []>} : vector<8x128xbf16>, vector<128x128xbf16>, vector<8x128xf32> -> vector<8x128xf32>
      %c0_35 = arith.constant 0 : index
      %c0_36 = arith.constant 0 : index
      %49 = vector.load %arg8[%c0_35, %c0_36] : memref<1x128xf32, #tpu.memory_space<vmem>>, vector<1x128xf32>
      %50 = vector.broadcast %49 : vector<1x128xf32> to vector<8x128xf32>
      %51 = arith.addf %48, %50 : vector<8x128xf32>
      %52 = arith.mulf %51, %51 : vector<8x128xf32>
      %cst_37 = arith.constant dense<0.000000e+00> : vector<8xf32>
      %53 = vector.multi_reduction <add>, %52, %cst_37 [1] : vector<8x128xf32> to vector<8xf32>
      %54 = vector.shape_cast %53 : vector<8xf32> to vector<8x1xf32>
      %cst_38 = arith.constant 1.000000e-24 : f32
      %55 = vector.broadcast %cst_38 : f32 to vector<8x1xf32>
      %56 = arith.maximumf %54, %55 : vector<8x1xf32>
      %57 = math.rsqrt %56 : vector<8x1xf32>
      %58 = vector.broadcast %57 : vector<8x1xf32> to vector<8x128xf32>
      %59 = arith.mulf %51, %58 : vector<8x128xf32>
      %c0_39 = arith.constant 0 : index
      %c0_40 = arith.constant 0 : index
      %60 = vector.load %arg4[%c0_39, %c0_40] : memref<8x1024xbf16, #tpu.memory_space<vmem>>, vector<8x1024xbf16>
      %c0_41 = arith.constant 0 : index
      %c0_42 = arith.constant 0 : index
      %61 = vector.load %arg9[%c0_41, %c0_42] : memref<1024x128xbf16, #tpu.memory_space<vmem>>, vector<1024x128xbf16>
      %cst_43 = arith.constant dense<0.000000e+00> : vector<8x128xf32>
      %62 = tpu.matmul %60, %61, %cst_43 {dimension_numbers = #tpu.dot_dimension_numbers<[1], [0], [0], [1], [0, 0, 1, 1], [], []>} : vector<8x1024xbf16>, vector<1024x128xbf16>, vector<8x128xf32> -> vector<8x128xf32>
      %c0_44 = arith.constant 0 : index
      %c0_45 = arith.constant 0 : index
      %63 = vector.load %arg10[%c0_44, %c0_45] : memref<1x128xf32, #tpu.memory_space<vmem>>, vector<1x128xf32>
      %64 = vector.broadcast %63 : vector<1x128xf32> to vector<8x128xf32>
      %65 = arith.addf %62, %64 : vector<8x128xf32>
      %cst_46 = arith.constant 0.000000e+00 : f32
      %66 = vector.broadcast %cst_46 : f32 to vector<8x128xf32>
      %67 = arith.maximumf %65, %66 : vector<8x128xf32>
      %68 = arith.truncf %67 : vector<8x128xf32> to vector<8x128xbf16>
      %c0_47 = arith.constant 0 : index
      %c0_48 = arith.constant 0 : index
      %69 = vector.load %arg11[%c0_47, %c0_48] : memref<128x128xbf16, #tpu.memory_space<vmem>>, vector<128x128xbf16>
      %cst_49 = arith.constant dense<0.000000e+00> : vector<8x128xf32>
      %70 = tpu.matmul %68, %69, %cst_49 {dimension_numbers = #tpu.dot_dimension_numbers<[1], [0], [0], [1], [0, 0, 1, 1], [], []>} : vector<8x128xbf16>, vector<128x128xbf16>, vector<8x128xf32> -> vector<8x128xf32>
      %c0_50 = arith.constant 0 : index
      %c0_51 = arith.constant 0 : index
      %71 = vector.load %arg12[%c0_50, %c0_51] : memref<1x128xf32, #tpu.memory_space<vmem>>, vector<1x128xf32>
      %72 = vector.broadcast %71 : vector<1x128xf32> to vector<8x128xf32>
      %73 = arith.addf %70, %72 : vector<8x128xf32>
      %74 = arith.mulf %73, %73 : vector<8x128xf32>
      %cst_52 = arith.constant dense<0.000000e+00> : vector<8xf32>
      %75 = vector.multi_reduction <add>, %74, %cst_52 [1] : vector<8x128xf32> to vector<8xf32>
      %76 = vector.shape_cast %75 : vector<8xf32> to vector<8x1xf32>
      %cst_53 = arith.constant 1.000000e-24 : f32
      %77 = vector.broadcast %cst_53 : f32 to vector<8x1xf32>
      %78 = arith.maximumf %76, %77 : vector<8x1xf32>
      %79 = math.rsqrt %78 : vector<8x1xf32>
      %80 = vector.broadcast %79 : vector<8x1xf32> to vector<8x128xf32>
      %81 = arith.mulf %73, %80 : vector<8x128xf32>
      %c0_54 = arith.constant 0 : index
      %c0_55 = arith.constant 0 : index
      %82 = vector.load %arg14[%c0_54, %c0_55] : memref<8x128xf32, #tpu.memory_space<vmem>>, vector<8x128xf32>
      tpu.vector_store %arg14[%c0_54, %c0_55], %81 {strides = array<i32>} : memref<8x128xf32, #tpu.memory_space<vmem>>, vector<8x128xf32>,
      %83 = arith.truncf %59 : vector<8x128xf32> to vector<8x128xbf16>
      %c0_56 = arith.constant 0 : index
      %c0_57 = arith.constant 0 : index
      %84 = vector.load %arg16[%c0_56, %c0_57] : memref<8x128xbf16, #tpu.memory_space<vmem>>, vector<8x128xbf16>
      tpu.vector_store %arg16[%c0_56, %c0_57], %83 {strides = array<i32>} : memref<8x128xbf16, #tpu.memory_space<vmem>>, vector<8x128xbf16>,
      %85 = arith.mulf %59, %81 : vector<8x128xf32>
      %cst_58 = arith.constant dense<0.000000e+00> : vector<8xf32>
      %86 = vector.multi_reduction <add>, %85, %cst_58 [1] : vector<8x128xf32> to vector<8xf32>
      %87 = vector.shape_cast %86 : vector<8xf32> to vector<8x1xf32>
      %88 = vector.broadcast %0 : f32 to vector<8x1xf32>
      %89 = arith.mulf %87, %88 : vector<8x1xf32>
      %c0_59 = arith.constant 0 : index
      %c0_60 = arith.constant 0 : index
      %90 = vector.load %arg17[%c0_59, %c0_60] : memref<8x1xf32, #tpu.memory_space<vmem>>, vector<8x1xf32>
      tpu.vector_store %arg17[%c0_59, %c0_60], %89 {strides = array<i32>} : memref<8x1xf32, #tpu.memory_space<vmem>>, vector<8x1xf32>,
      %c0_61 = arith.constant 0 : index
      %c0_62 = arith.constant 0 : index
      %91 = vector.load %arg18[%c0_61, %c0_62] : memref<8x1xf32, #tpu.memory_space<vmem>>, vector<8x1xf32>
      tpu.vector_store %arg18[%c0_61, %c0_62], %89 {strides = array<i32>} : memref<8x1xf32, #tpu.memory_space<vmem>>, vector<8x1xf32>,
      %cst_63 = arith.constant 1.000000e+00 : f32
      %92 = vector.broadcast %cst_63 : f32 to vector<8x1xf32>
      %c0_64 = arith.constant 0 : index
      %c0_65 = arith.constant 0 : index
      %93 = vector.load %arg19[%c0_64, %c0_65] : memref<8x1xf32, #tpu.memory_space<vmem>>, vector<8x1xf32>
      tpu.vector_store %arg19[%c0_64, %c0_65], %92 {strides = array<i32>} : memref<8x1xf32, #tpu.memory_space<vmem>>, vector<8x1xf32>,
      %cst_66 = arith.constant 0.000000e+00 : f32
      %94 = vector.broadcast %cst_66 : f32 to vector<8x1xf32>
      %c0_67 = arith.constant 0 : index
      %c0_68 = arith.constant 0 : index
      %95 = vector.load %arg20[%c0_67, %c0_68] : memref<8x1xf32, #tpu.memory_space<vmem>>, vector<8x1xf32>
      tpu.vector_store %arg20[%c0_67, %c0_68], %94 {strides = array<i32>} : memref<8x1xf32, #tpu.memory_space<vmem>>, vector<8x1xf32>,
    } else {
    }
    %c0_2 = arith.constant 0 : index
    %c0_3 = arith.constant 0 : index
    %4 = vector.load %arg16[%c0_2, %c0_3] : memref<8x128xbf16, #tpu.memory_space<vmem>>, vector<8x128xbf16>
    %c0_4 = arith.constant 0 : index
    %c0_5 = arith.constant 0 : index
    %5 = vector.load %arg13[%c0_4, %c0_5] : memref<128x128xbf16, #tpu.memory_space<vmem>>, vector<128x128xbf16>
    %cst = arith.constant dense<0.000000e+00> : vector<8x128xf32>
    %6 = tpu.matmul %4, %5, %cst {dimension_numbers = #tpu.dot_dimension_numbers<[1], [0], [0], [1], [0, 0, 1, 1], [], []>} : vector<8x128xbf16>, vector<128x128xbf16>, vector<8x128xf32> -> vector<8x128xf32>
    %7 = vector.broadcast %0 : f32 to vector<8x128xf32>
    %8 = arith.mulf %6, %7 : vector<8x128xf32>
    %c0_6 = arith.constant 0 : index
    %c0_7 = arith.constant 0 : index
    %9 = vector.load %arg18[%c0_6, %c0_7] : memref<8x1xf32, #tpu.memory_space<vmem>>, vector<8x1xf32>
    %cst_8 = arith.constant dense<0xFF800000> : vector<8xf32>
    %10 = vector.multi_reduction <maximumf>, %8, %cst_8 [1] : vector<8x128xf32> to vector<8xf32>
    %11 = vector.shape_cast %10 : vector<8xf32> to vector<8x1xf32>
    %12 = arith.maximumf %9, %11 : vector<8x1xf32>
    %13 = arith.subf %9, %12 : vector<8x1xf32>
    %14 = math.exp %13 : vector<8x1xf32>
    %c0_9 = arith.constant 0 : index
    %c0_10 = arith.constant 0 : index
    %15 = vector.load %arg19[%c0_9, %c0_10] : memref<8x1xf32, #tpu.memory_space<vmem>>, vector<8x1xf32>
    %16 = arith.mulf %14, %15 : vector<8x1xf32>
    %17 = vector.broadcast %12 : vector<8x1xf32> to vector<8x128xf32>
    %18 = arith.subf %8, %17 : vector<8x128xf32>
    %19 = math.exp %18 : vector<8x128xf32>
    %cst_11 = arith.constant dense<0.000000e+00> : vector<8xf32>
    %20 = vector.multi_reduction <add>, %19, %cst_11 [1] : vector<8x128xf32> to vector<8xf32>
    %21 = vector.shape_cast %20 : vector<8xf32> to vector<8x1xf32>
    %22 = arith.addf %16, %21 : vector<8x1xf32>
    %c0_12 = arith.constant 0 : index
    %c0_13 = arith.constant 0 : index
    %23 = vector.load %arg19[%c0_12, %c0_13] : memref<8x1xf32, #tpu.memory_space<vmem>>, vector<8x1xf32>
    tpu.vector_store %arg19[%c0_12, %c0_13], %22 {strides = array<i32>} : memref<8x1xf32, #tpu.memory_space<vmem>>, vector<8x1xf32>,
    %c0_14 = arith.constant 0 : index
    %c0_15 = arith.constant 0 : index
    %24 = vector.load %arg18[%c0_14, %c0_15] : memref<8x1xf32, #tpu.memory_space<vmem>>, vector<8x1xf32>
    tpu.vector_store %arg18[%c0_14, %c0_15], %12 {strides = array<i32>} : memref<8x1xf32, #tpu.memory_space<vmem>>, vector<8x1xf32>,
    %c0_16 = arith.constant 0 : index
    %c0_17 = arith.constant 0 : index
    %25 = vector.load %arg20[%c0_16, %c0_17] : memref<8x1xf32, #tpu.memory_space<vmem>>, vector<8x1xf32>
    %c0_18 = arith.constant 0 : index
    %c0_19 = arith.constant 0 : index
    %26 = vector.load %arg17[%c0_18, %c0_19] : memref<8x1xf32, #tpu.memory_space<vmem>>, vector<8x1xf32>
    %27 = vector.broadcast %26 : vector<8x1xf32> to vector<8x128xf32>
    %28 = arith.cmpf ogt, %8, %27 : vector<8x128xf32>
    %29 = arith.extui %28 : vector<8x128xi1> to vector<8x128xi32>
    %30 = arith.sitofp %29 : vector<8x128xi32> to vector<8x128xf32>
    %cst_20 = arith.constant dense<0.000000e+00> : vector<8xf32>
    %31 = vector.multi_reduction <add>, %30, %cst_20 [1] : vector<8x128xf32> to vector<8xf32>
    %32 = vector.shape_cast %31 : vector<8xf32> to vector<8x1xf32>
    %33 = arith.addf %25, %32 : vector<8x1xf32>
    %c0_21 = arith.constant 0 : index
    %c0_22 = arith.constant 0 : index
    %34 = vector.load %arg20[%c0_21, %c0_22] : memref<8x1xf32, #tpu.memory_space<vmem>>, vector<8x1xf32>
    tpu.vector_store %arg20[%c0_21, %c0_22], %33 {strides = array<i32>} : memref<8x1xf32, #tpu.memory_space<vmem>>, vector<8x1xf32>,
    %c3_i32 = arith.constant 3 : i32
    %35 = arith.cmpi eq, %arg1, %c3_i32 : i32
    %36 = arith.extui %35 : i1 to i32
    %c0_i32_23 = arith.constant 0 : i32
    %37 = arith.cmpi ne, %36, %c0_i32_23 : i32
    scf.if %37 {
      %c0_24 = arith.constant 0 : index
      %c0_25 = arith.constant 0 : index
      %38 = vector.load %arg18[%c0_24, %c0_25] : memref<8x1xf32, #tpu.memory_space<vmem>>, vector<8x1xf32>
      %c0_26 = arith.constant 0 : index
      %c0_27 = arith.constant 0 : index
      %39 = vector.load %arg19[%c0_26, %c0_27] : memref<8x1xf32, #tpu.memory_space<vmem>>, vector<8x1xf32>
      %40 = math.log %39 : vector<8x1xf32>
      %41 = arith.addf %38, %40 : vector<8x1xf32>
      %c0_28 = arith.constant 0 : index
      %c0_29 = arith.constant 0 : index
      %42 = vector.load %arg17[%c0_28, %c0_29] : memref<8x1xf32, #tpu.memory_space<vmem>>, vector<8x1xf32>
      %43 = arith.subf %41, %42 : vector<8x1xf32>
      %44 = tpu.iota {dimensions = array<i32: 1>} : vector<8x128xi32>
      %c0_i32_30 = arith.constant 0 : i32
      %45 = vector.broadcast %c0_i32_30 : i32 to vector<8x128xi32>
      %46 = arith.cmpi eq, %44, %45 : vector<8x128xi32>
      %cst_31 = arith.constant 0.000000e+00 : f32
      %47 = vector.shape_cast %43 : vector<8x1xf32> to vector<8x1xf32>
      %48 = vector.broadcast %47 : vector<8x1xf32> to vector<8x128xf32>
      %49 = vector.broadcast %cst_31 : f32 to vector<8x128xf32>
      %50 = arith.select %46, %48, %49 : vector<8x128xi1>, vector<8x128xf32>
      %c1_i32 = arith.constant 1 : i32
      %51 = vector.broadcast %c1_i32 : i32 to vector<8x128xi32>
      %52 = arith.cmpi eq, %44, %51 : vector<8x128xi32>
      %c0_32 = arith.constant 0 : index
      %c0_33 = arith.constant 0 : index
      %53 = vector.load %arg20[%c0_32, %c0_33] : memref<8x1xf32, #tpu.memory_space<vmem>>, vector<8x1xf32>
      %cst_34 = arith.constant 0.000000e+00 : f32
      %54 = vector.shape_cast %53 : vector<8x1xf32> to vector<8x1xf32>
      %55 = vector.broadcast %54 : vector<8x1xf32> to vector<8x128xf32>
      %56 = vector.broadcast %cst_34 : f32 to vector<8x128xf32>
      %57 = arith.select %52, %55, %56 : vector<8x128xi1>, vector<8x128xf32>
      %58 = arith.addf %50, %57 : vector<8x128xf32>
      %c0_35 = arith.constant 0 : index
      %c0_36 = arith.constant 0 : index
      %59 = vector.load %arg15[%c0_35, %c0_36] : memref<8x128xf32, #tpu.memory_space<vmem>>, vector<8x128xf32>
      tpu.vector_store %arg15[%c0_35, %c0_36], %58 {strides = array<i32>} : memref<8x128xf32, #tpu.memory_space<vmem>>, vector<8x128xf32>,
    } else {
    }
    return
  }
  func.func @transform_0(%arg0: i32, %arg1: i32) -> (i32, i32) {
    %c0_i32 = arith.constant 0 : i32
    %c0_i32_0 = arith.constant 0 : i32
    %c0_i32_1 = arith.constant 0 : i32
    return %c0_i32, %c0_i32_0 : i32, i32
  }
  func.func @transform_1(%arg0: i32, %arg1: i32) -> (i32, i32) {
    %c0_i32 = arith.constant 0 : i32
    %c0_i32_0 = arith.constant 0 : i32
    return %arg0, %c0_i32 : i32, i32
  }
  func.func @transform_2(%arg0: i32, %arg1: i32) -> (i32, i32) {
    %c0_i32 = arith.constant 0 : i32
    %c0_i32_0 = arith.constant 0 : i32
    return %arg0, %c0_i32 : i32, i32
  }
  func.func @transform_3(%arg0: i32, %arg1: i32) -> (i32, i32) {
    %c0_i32 = arith.constant 0 : i32
    %c0_i32_0 = arith.constant 0 : i32
    %c0_i32_1 = arith.constant 0 : i32
    return %c0_i32, %c0_i32_0 : i32, i32
  }
  func.func @transform_4(%arg0: i32, %arg1: i32) -> (i32, i32) {
    %c0_i32 = arith.constant 0 : i32
    %c0_i32_0 = arith.constant 0 : i32
    %c0_i32_1 = arith.constant 0 : i32
    return %c0_i32, %c0_i32_0 : i32, i32
  }
  func.func @transform_5(%arg0: i32, %arg1: i32) -> (i32, i32) {
    %c0_i32 = arith.constant 0 : i32
    %c0_i32_0 = arith.constant 0 : i32
    %c0_i32_1 = arith.constant 0 : i32
    return %c0_i32, %c0_i32_0 : i32, i32
  }
  func.func @transform_6(%arg0: i32, %arg1: i32) -> (i32, i32) {
    %c0_i32 = arith.constant 0 : i32
    %c0_i32_0 = arith.constant 0 : i32
    %c0_i32_1 = arith.constant 0 : i32
    return %c0_i32, %c0_i32_0 : i32, i32
  }
  func.func @transform_7(%arg0: i32, %arg1: i32) -> (i32, i32) {
    %c0_i32 = arith.constant 0 : i32
    %c0_i32_0 = arith.constant 0 : i32
    %c0_i32_1 = arith.constant 0 : i32
    return %c0_i32, %c0_i32_0 : i32, i32
  }
  func.func @transform_8(%arg0: i32, %arg1: i32) -> (i32, i32) {
    %c0_i32 = arith.constant 0 : i32
    %c0_i32_0 = arith.constant 0 : i32
    %c0_i32_1 = arith.constant 0 : i32
    return %c0_i32, %c0_i32_0 : i32, i32
  }
  func.func @transform_9(%arg0: i32, %arg1: i32) -> (i32, i32) {
    %c0_i32 = arith.constant 0 : i32
    %c0_i32_0 = arith.constant 0 : i32
    %c0_i32_1 = arith.constant 0 : i32
    return %c0_i32, %c0_i32_0 : i32, i32
  }
  func.func @transform_10(%arg0: i32, %arg1: i32) -> (i32, i32) {
    %c0_i32 = arith.constant 0 : i32
    %c0_i32_0 = arith.constant 0 : i32
    %c0_i32_1 = arith.constant 0 : i32
    return %c0_i32, %c0_i32_0 : i32, i32
  }
  func.func @transform_11(%arg0: i32, %arg1: i32) -> (i32, i32) {
    %c0_i32 = arith.constant 0 : i32
    %c0_i32_0 = arith.constant 0 : i32
    return %c0_i32, %arg1 : i32, i32
  }
  func.func @transform_12(%arg0: i32, %arg1: i32) -> (i32, i32) {
    %c0_i32 = arith.constant 0 : i32
    %c0_i32_0 = arith.constant 0 : i32
    return %arg0, %c0_i32 : i32, i32
  }
  func.func @transform_13(%arg0: i32, %arg1: i32) -> (i32, i32) {
    %c0_i32 = arith.constant 0 : i32
    %c0_i32_0 = arith.constant 0 : i32
    return %arg0, %c0_i32 : i32, i32
  }
}

</mosaic_0001>

<llo_original>
// kernel: moco_v2_forward.1
$region0: #{moco_v2_forward.1}
  #allocation0 [shape = 'u32[]', space=smem, size = 0x4, offset = 0x4, fixed_abs, tag = 'smem constant byte address 0x4 - core index']
  #allocation1 [shape = 'u32[144,128]{1,0:T(1,128)}', space=vmem, size = 0x12000, scoped, tag = 'internal scratch']
  #allocation2 [shape = 'bf16[8,128]{1,0:T(8,128)(2,1)}', space=vmem, size = 0x800, scoped, tag = 'scratch operand']
  #allocation3 [shape = 'f32[8,1]{1,0:T(8,128)}', space=vmem, size = 0x1000, scoped, tag = 'scratch operand']
  #allocation4 [shape = 'f32[8,1]{1,0:T(8,128)}', space=vmem, size = 0x1000, scoped, tag = 'scratch operand']
  #allocation5 [shape = 'f32[8,1]{1,0:T(8,128)}', space=vmem, size = 0x1000, scoped, tag = 'scratch operand']
  #allocation6 [shape = 'f32[8,1]{1,0:T(8,128)}', space=vmem, size = 0x1000, scoped, tag = 'scratch operand']
  #allocation7 [shape = 'f32[1,1]{1,0:T(1,128)S(6)}', space=smem, size = 0x200, scoped, tag = 'scoped memory for moco_v2_forward.1']
  %s0 = inlined_call_operand.<no memory space> [shape: f32[1,1], index: 0, kind: input, shape index: {}]
  %s1 = inlined_call_operand.vmem [shape: bf16[8,1024], index: 1, kind: input, shape index: {}]
  %s2 = inlined_call_operand.vmem [shape: bf16[8,1024], index: 2, kind: input, shape index: {}]
  %s3 = inlined_call_operand.vmem [shape: bf16[1024,128], index: 3, kind: input, shape index: {}]
  %s4 = inlined_call_operand.vmem [shape: f32[1,128], index: 4, kind: input, shape index: {}]
  %s5 = inlined_call_operand.vmem [shape: bf16[128,128], index: 5, kind: input, shape index: {}]
  %s6 = inlined_call_operand.vmem [shape: f32[1,128], index: 6, kind: input, shape index: {}]
  %s7 = inlined_call_operand.vmem [shape: bf16[1024,128], index: 7, kind: input, shape index: {}]
  %s8 = inlined_call_operand.vmem [shape: f32[1,128], index: 8, kind: input, shape index: {}]
  %s9 = inlined_call_operand.vmem [shape: bf16[128,128], index: 9, kind: input, shape index: {}]
  %s10 = inlined_call_operand.vmem [shape: f32[1,128], index: 10, kind: input, shape index: {}]
  %s11 = inlined_call_operand.vmem [shape: bf16[128,512], index: 11, kind: input, shape index: {}]
  %s12 = inlined_call_operand.vmem [shape: f32[8,128], index: 12, kind: output, shape index: {0}]
  %s13 = inlined_call_operand.vmem [shape: f32[8,128], index: 13, kind: output, shape index: {1}]
  %14 = xla_tuple %s12, %s13
  %s15 = sld [smem:[#allocation0]]
  $region138: #{moco_v2_forward.1} parent=0
    _
  %s17 = ssub.s32 1, %s15
  %s18 = scalar_select 0, %s17, %s15
  %19 = sst [smem:[#allocation7]] %s0
  $region1: #{moco_v2_forward.1} parent=0
    #allocation8 [shape = 'u8[65536]{0}', space=vmem, size = 0x10000, scoped, tag = 'input window, operand 11']
    loop: start=0, step=1, limit=6
    $region2: #{moco_v2_forward.1} parent=1 // loop_pre_header
      _
    $region3: #{moco_v2_forward.1} parent=1 // loop_header
      %s21 = sphi 0, %s25
      %p22 = scmp.ge.s32.totalorder %s21, 6
      %s28 = sphi 0, %s40
      %s29 = sphi 0, %s36
      %s30 = sphi 0, %s28
      %s31 = sphi 0, %s29
      %s32 = sphi 0, %s30
      %s33 = sphi 0, %s31
      %s41 = sphi 0, %s41
      %s43 = sphi 0, %s41
      %s44 = sphi 0, %s43
      %s58 = sphi 0, %s44
      %s64 = sphi 0, %s66
      %s67 = sphi 0, %s64
      %s68 = sphi 0, %s67
      %s84 = sphi 0, %s68
      %s90 = sphi 0, %s92
      %s93 = sphi 0, %s90
      %s94 = sphi 0, %s93
      %s110 = sphi 0, %s94
      %s114 = sphi 0, %s114
      %s116 = sphi 0, %s114
      %s117 = sphi 0, %s116
      %s131 = sphi 0, %s117
      %s135 = sphi 0, %s135
      %s137 = sphi 0, %s135
      %s138 = sphi 0, %s137
      %s152 = sphi 0, %s138
      %s156 = sphi 0, %s156
      %s158 = sphi 0, %s156
      %s159 = sphi 0, %s158
      %s173 = sphi 0, %s159
      %s177 = sphi 0, %s177
      %s179 = sphi 0, %s177
      %s180 = sphi 0, %s179
      %s194 = sphi 0, %s180
      %s198 = sphi 0, %s198
      %s200 = sphi 0, %s198
      %s201 = sphi 0, %s200
      %s215 = sphi 0, %s201
      %s219 = sphi 0, %s219
      %s221 = sphi 0, %s219
      %s222 = sphi 0, %s221
      %s236 = sphi 0, %s222
      %s240 = sphi 0, %s240
      %s242 = sphi 0, %s240
      %s243 = sphi 0, %s242
      %s257 = sphi 0, %s243
      %s261 = sphi 0, %s261
      %s263 = sphi 0, %s261
      %s264 = sphi 0, %s263
      %s278 = sphi 0, %s264
      %s284 = sphi 0, %s286
      %s287 = sphi 0, %s284
      %s288 = sphi 0, %s287
      %s304 = sphi 0, %s288
      %s310 = sphi 0, %s312
      %s313 = sphi 0, %s310
      %s314 = sphi 0, %s313
      %s330 = sphi 0, %s314
      %s336 = sphi 0, %s338
      %s339 = sphi 0, %s336
      %s340 = sphi 0, %s339
      %s356 = sphi 0, %s340
    $region4: #{moco_v2_forward.1} parent=1 // loop_header_branch
      %24 = sbr.rel (%p22) target = $region8
    $region5: #{moco_v2_forward.1} parent=1 // loop_body
      %s26 = ssub.s32 %s21, 1
      %s27 = ssub.s32 %s21, 2
      %s34 = sadd.s32 1, %s29
      %p35 = scmp.ge.s32.totalorder %s34, 4
      %s36 = scalar_select %p35, 0, %s34
      %s37 = sadd.s32 1, %s28
      %s38 = scalar_select %p35, %s37, %s28
      %p39 = scmp.ge.s32.totalorder %s38, 1
      %s40 = scalar_select %p39, 0, %s38
      %s42 = sadd.s32 %s41, 1
      %p45 = scmp.eq.s32.totalorder %s21, 3
      %p46 = scmp.ne.s32.totalorder %s41, %s43
      %p47 = scmp.eq.s32.totalorder %s21, 0
      %p48 = por %p46, %p47
      %p49 = scmp.ne.s32.totalorder %s41, %s43
      %p50 = scmp.eq.s32.totalorder %s26, 3
      %p51 = por %p49, %p50
      %p52 = scmp.ne.s32.totalorder %s43, %s44
      %p53 = scmp.eq.s32.totalorder %s26, 0
      %p54 = por %p52, %p53
      %p55 = scmp.ne.s32.totalorder %s43, %s44
      %p56 = scmp.eq.s32.totalorder %s27, 3
      %p57 = por %p55, %p56
      %p59 = scmp.ne.s32.totalorder %s44, %s58
      %p60 = scmp.eq.s32.totalorder %s27, 0
      %p61 = por %p59, %p60
      %s62 = ssub.s32 %s28, %s40
      %p63 = scmp.eq.s32.totalorder %s62, 0
      %s65 = sadd.s32 %s64, 1
      %s66 = scalar_select %p63, %s64, %s65
      %p69 = pneg %p63
      %p70 = scmp.eq.s32.totalorder %s21, 3
      %p71 = por %p69, %p70
      %p72 = scmp.ne.s32.totalorder %s64, %s67
      %p73 = scmp.eq.s32.totalorder %s21, 0
      %p74 = por %p72, %p73
      %p75 = scmp.ne.s32.totalorder %s64, %s67
      %p76 = scmp.eq.s32.totalorder %s26, 3
      %p77 = por %p75, %p76
      %p78 = scmp.ne.s32.totalorder %s67, %s68
      %p79 = scmp.eq.s32.totalorder %s26, 0
      %p80 = por %p78, %p79
      %p81 = scmp.ne.s32.totalorder %s67, %s68
      %p82 = scmp.eq.s32.totalorder %s27, 3
      %p83 = por %p81, %p82
      %p85 = scmp.ne.s32.totalorder %s68, %s84
      %p86 = scmp.eq.s32.totalorder %s27, 0
      %p87 = por %p85, %p86
      %s88 = ssub.s32 %s28, %s40
      %p89 = scmp.eq.s32.totalorder %s88, 0
      %s91 = sadd.s32 %s90, 1
      %s92 = scalar_select %p89, %s90, %s91
      %p95 = pneg %p89
      %p96 = scmp.eq.s32.totalorder %s21, 3
      %p97 = por %p95, %p96
      %p98 = scmp.ne.s32.totalorder %s90, %s93
      %p99 = scmp.eq.s32.totalorder %s21, 0
      %p100 = por %p98, %p99
      %p101 = scmp.ne.s32.totalorder %s90, %s93
      %p102 = scmp.eq.s32.totalorder %s26, 3
      %p103 = por %p101, %p102
      %p104 = scmp.ne.s32.totalorder %s93, %s94
      %p105 = scmp.eq.s32.totalorder %s26, 0
      %p106 = por %p104, %p105
      %p107 = scmp.ne.s32.totalorder %s93, %s94
      %p108 = scmp.eq.s32.totalorder %s27, 3
      %p109 = por %p107, %p108
      %p111 = scmp.ne.s32.totalorder %s94, %s110
      %p112 = scmp.eq.s32.totalorder %s27, 0
      %p113 = por %p111, %p112
      %s115 = sadd.s32 %s114, 1
      %p118 = scmp.eq.s32.totalorder %s21, 3
      %p119 = scmp.ne.s32.totalorder %s114, %s116
      %p120 = scmp.eq.s32.totalorder %s21, 0
      %p121 = por %p119, %p120
      %p122 = scmp.ne.s32.totalorder %s114, %s116
      %p123 = scmp.eq.s32.totalorder %s26, 3
      %p124 = por %p122, %p123
      %p125 = scmp.ne.s32.totalorder %s116, %s117
      %p126 = scmp.eq.s32.totalorder %s26, 0
      %p127 = por %p125, %p126
      %p128 = scmp.ne.s32.totalorder %s116, %s117
      %p129 = scmp.eq.s32.totalorder %s27, 3
      %p130 = por %p128, %p129
      %p132 = scmp.ne.s32.totalorder %s117, %s131
      %p133 = scmp.eq.s32.totalorder %s27, 0
      %p134 = por %p132, %p133
      %s136 = sadd.s32 %s135, 1
      %p139 = scmp.eq.s32.totalorder %s21, 3
      %p140 = scmp.ne.s32.totalorder %s135, %s137
      %p141 = scmp.eq.s32.totalorder %s21, 0
      %p142 = por %p140, %p141
      %p143 = scmp.ne.s32.totalorder %s135, %s137
      %p144 = scmp.eq.s32.totalorder %s26, 3
      %p145 = por %p143, %p144
      %p146 = scmp.ne.s32.totalorder %s137, %s138
      %p147 = scmp.eq.s32.totalorder %s26, 0
      %p148 = por %p146, %p147
      %p149 = scmp.ne.s32.totalorder %s137, %s138
      %p150 = scmp.eq.s32.totalorder %s27, 3
      %p151 = por %p149, %p150
      %p153 = scmp.ne.s32.totalorder %s138, %s152
      %p154 = scmp.eq.s32.totalorder %s27, 0
      %p155 = por %p153, %p154
      %s157 = sadd.s32 %s156, 1
      %p160 = scmp.eq.s32.totalorder %s21, 3
      %p161 = scmp.ne.s32.totalorder %s156, %s158
      %p162 = scmp.eq.s32.totalorder %s21, 0
      %p163 = por %p161, %p162
      %p164 = scmp.ne.s32.totalorder %s156, %s158
      %p165 = scmp.eq.s32.totalorder %s26, 3
      %p166 = por %p164, %p165
      %p167 = scmp.ne.s32.totalorder %s158, %s159
      %p168 = scmp.eq.s32.totalorder %s26, 0
      %p169 = por %p167, %p168
      %p170 = scmp.ne.s32.totalorder %s158, %s159
      %p171 = scmp.eq.s32.totalorder %s27, 3
      %p172 = por %p170, %p171
      %p174 = scmp.ne.s32.totalorder %s159, %s173
      %p175 = scmp.eq.s32.totalorder %s27, 0
      %p176 = por %p174, %p175
      %s178 = sadd.s32 %s177, 1
      %p181 = scmp.eq.s32.totalorder %s21, 3
      %p182 = scmp.ne.s32.totalorder %s177, %s179
      %p183 = scmp.eq.s32.totalorder %s21, 0
      %p184 = por %p182, %p183
      %p185 = scmp.ne.s32.totalorder %s177, %s179
      %p186 = scmp.eq.s32.totalorder %s26, 3
      %p187 = por %p185, %p186
      %p188 = scmp.ne.s32.totalorder %s179, %s180
      %p189 = scmp.eq.s32.totalorder %s26, 0
      %p190 = por %p188, %p189
      %p191 = scmp.ne.s32.totalorder %s179, %s180
      %p192 = scmp.eq.s32.totalorder %s27, 3
      %p193 = por %p191, %p192
      %p195 = scmp.ne.s32.totalorder %s180, %s194
      %p196 = scmp.eq.s32.totalorder %s27, 0
      %p197 = por %p195, %p196
      %s199 = sadd.s32 %s198, 1
      %p202 = scmp.eq.s32.totalorder %s21, 3
      %p203 = scmp.ne.s32.totalorder %s198, %s200
      %p204 = scmp.eq.s32.totalorder %s21, 0
      %p205 = por %p203, %p204
      %p206 = scmp.ne.s32.totalorder %s198, %s200
      %p207 = scmp.eq.s32.totalorder %s26, 3
      %p208 = por %p206, %p207
      %p209 = scmp.ne.s32.totalorder %s200, %s201
      %p210 = scmp.eq.s32.totalorder %s26, 0
      %p211 = por %p209, %p210
      %p212 = scmp.ne.s32.totalorder %s200, %s201
      %p213 = scmp.eq.s32.totalorder %s27, 3
      %p214 = por %p212, %p213
      %p216 = scmp.ne.s32.totalorder %s201, %s215
      %p217 = scmp.eq.s32.totalorder %s27, 0
      %p218 = por %p216, %p217
      %s220 = sadd.s32 %s219, 1
      %p223 = scmp.eq.s32.totalorder %s21, 3
      %p224 = scmp.ne.s32.totalorder %s219, %s221
      %p225 = scmp.eq.s32.totalorder %s21, 0
      %p226 = por %p224, %p225
      %p227 = scmp.ne.s32.totalorder %s219, %s221
      %p228 = scmp.eq.s32.totalorder %s26, 3
      %p229 = por %p227, %p228
      %p230 = scmp.ne.s32.totalorder %s221, %s222
      %p231 = scmp.eq.s32.totalorder %s26, 0
      %p232 = por %p230, %p231
      %p233 = scmp.ne.s32.totalorder %s221, %s222
      %p234 = scmp.eq.s32.totalorder %s27, 3
      %p235 = por %p233, %p234
      %p237 = scmp.ne.s32.totalorder %s222, %s236
      %p238 = scmp.eq.s32.totalorder %s27, 0
      %p239 = por %p237, %p238
      %s241 = sadd.s32 %s240, 1
      %p244 = scmp.eq.s32.totalorder %s21, 3
      %p245 = scmp.ne.s32.totalorder %s240, %s242
      %p246 = scmp.eq.s32.totalorder %s21, 0
      %p247 = por %p245, %p246
      %p248 = scmp.ne.s32.totalorder %s240, %s242
      %p249 = scmp.eq.s32.totalorder %s26, 3
      %p250 = por %p248, %p249
      %p251 = scmp.ne.s32.totalorder %s242, %s243
      %p252 = scmp.eq.s32.totalorder %s26, 0
      %p253 = por %p251, %p252
      %p254 = scmp.ne.s32.totalorder %s242, %s243
      %p255 = scmp.eq.s32.totalorder %s27, 3
      %p256 = por %p254, %p255
      %p258 = scmp.ne.s32.totalorder %s243, %s257
      %p259 = scmp.eq.s32.totalorder %s27, 0
      %p260 = por %p258, %p259
      %s262 = sadd.s32 %s261, 1
      %p265 = scmp.eq.s32.totalorder %s21, 3
      %p266 = scmp.ne.s32.totalorder %s261, %s263
      %p267 = scmp.eq.s32.totalorder %s21, 0
      %p268 = por %p266, %p267
      %p269 = scmp.ne.s32.totalorder %s261, %s263
      %p270 = scmp.eq.s32.totalorder %s26, 3
      %p271 = por %p269, %p270
      %p272 = scmp.ne.s32.totalorder %s263, %s264
      %p273 = scmp.eq.s32.totalorder %s26, 0
      %p274 = por %p272, %p273
      %p275 = scmp.ne.s32.totalorder %s263, %s264
      %p276 = scmp.eq.s32.totalorder %s27, 3
      %p277 = por %p275, %p276
      %p279 = scmp.ne.s32.totalorder %s264, %s278
      %p280 = scmp.eq.s32.totalorder %s27, 0
      %p281 = por %p279, %p280
      %s282 = ssub.s32 %s29, %s36
      %p283 = scmp.eq.s32.totalorder %s282, 0
      %s285 = sadd.s32 %s284, 1
      %s286 = scalar_select %p283, %s284, %s285
      %p289 = pneg %p283
      %p290 = scmp.eq.s32.totalorder %s21, 3
      %p291 = por %p289, %p290
      %p292 = scmp.ne.s32.totalorder %s284, %s287
      %p293 = scmp.eq.s32.totalorder %s21, 0
      %p294 = por %p292, %p293
      %p295 = scmp.ne.s32.totalorder %s284, %s287
      %p296 = scmp.eq.s32.totalorder %s26, 3
      %p297 = por %p295, %p296
      %p298 = scmp.ne.s32.totalorder %s287, %s288
      %p299 = scmp.eq.s32.totalorder %s26, 0
      %p300 = por %p298, %p299
      %p301 = scmp.ne.s32.totalorder %s287, %s288
      %p302 = scmp.eq.s32.totalorder %s27, 3
      %p303 = por %p301, %p302
      %p305 = scmp.ne.s32.totalorder %s288, %s304
      %p306 = scmp.eq.s32.totalorder %s27, 0
      %p307 = por %p305, %p306
      %s308 = ssub.s32 %s28, %s40
      %p309 = scmp.eq.s32.totalorder %s308, 0
      %s311 = sadd.s32 %s310, 1
      %s312 = scalar_select %p309, %s310, %s311
      %p315 = pneg %p309
      %p316 = scmp.eq.s32.totalorder %s21, 3
      %p317 = por %p315, %p316
      %p318 = scmp.ne.s32.totalorder %s310, %s313
      %p319 = scmp.eq.s32.totalorder %s21, 0
      %p320 = por %p318, %p319
      %p321 = scmp.ne.s32.totalorder %s310, %s313
      %p322 = scmp.eq.s32.totalorder %s26, 3
      %p323 = por %p321, %p322
      %p324 = scmp.ne.s32.totalorder %s313, %s314
      %p325 = scmp.eq.s32.totalorder %s26, 0
      %p326 = por %p324, %p325
      %p327 = scmp.ne.s32.totalorder %s313, %s314
      %p328 = scmp.eq.s32.totalorder %s27, 3
      %p329 = por %p327, %p328
      %p331 = scmp.ne.s32.totalorder %s314, %s330
      %p332 = scmp.eq.s32.totalorder %s27, 0
      %p333 = por %p331, %p332
      %s334 = ssub.s32 %s28, %s40
      %p335 = scmp.eq.s32.totalorder %s334, 0
      %s337 = sadd.s32 %s336, 1
      %s338 = scalar_select %p335, %s336, %s337
      %p341 = pneg %p335
      %p342 = scmp.eq.s32.totalorder %s21, 3
      %p343 = por %p341, %p342
      %p344 = scmp.ne.s32.totalorder %s336, %s339
      %p345 = scmp.eq.s32.totalorder %s21, 0
      %p346 = por %p344, %p345
      %p347 = scmp.ne.s32.totalorder %s336, %s339
      %p348 = scmp.eq.s32.totalorder %s26, 3
      %p349 = por %p347, %p348
      %p350 = scmp.ne.s32.totalorder %s339, %s340
      %p351 = scmp.eq.s32.totalorder %s26, 0
      %p352 = por %p350, %p351
      %p353 = scmp.ne.s32.totalorder %s339, %s340
      %p354 = scmp.eq.s32.totalorder %s27, 3
      %p355 = por %p353, %p354
      %p357 = scmp.ne.s32.totalorder %s340, %s356
      %p358 = scmp.eq.s32.totalorder %s27, 0
      %p359 = por %p357, %p358
      %p360 = scmp.le.s32.totalorder 1, %s21
      %p361 = scmp.lt.s32.totalorder %s21, 5
      %p362 = pnand %p360, %p361
      %p363 = pneg %p362
      // Predicated region
      $region9: #{moco_v2_forward.1} parent=5 // pred_check
        _
      $region10: #{moco_v2_forward.1} parent=5 // pred_check_branch
        %365 = sbr.rel (%p362) target = $region12
      $region11: #{moco_v2_forward.1} parent=5 // pred_region
        %s366 = ssub.s32 %s21, 1
        // Predicated region
        $region13: #{moco_v2_forward.1} parent=11 // pred_check
          %p367 = pneg %p54
        $region14: #{moco_v2_forward.1} parent=11 // pred_check_branch
          %369 = sbr.rel (%p367) target = $region16
        $region15: #{moco_v2_forward.1} parent=11 // pred_region
          _
        $region16: #{moco_v2_forward.1} parent=11 // pred_fallthru
          _
        // Predicated region
        $region17: #{moco_v2_forward.1} parent=11 // pred_check
          %p370 = pneg %p80
        $region18: #{moco_v2_forward.1} parent=11 // pred_check_branch
          %372 = sbr.rel (%p370) target = $region20
        $region19: #{moco_v2_forward.1} parent=11 // pred_region
          %p373 = scmp.lt.s32.totalorder %s30, 0
          %s374 = scalar_select %p373, %s30, 0
          %s375 = smul.addr %s374, 8
          %s376 = smul.addr %s375, 4
          %s377 = scalar_lea.vmem %s1, %s376
        $region20: #{moco_v2_forward.1} parent=11 // pred_fallthru
          _
        // Predicated region
        $region21: #{moco_v2_forward.1} parent=11 // pred_check
          %p378 = pneg %p106
        $region22: #{moco_v2_forward.1} parent=11 // pred_check_branch
          %380 = sbr.rel (%p378) target = $region24
        $region23: #{moco_v2_forward.1} parent=11 // pred_region
          %p381 = scmp.lt.s32.totalorder %s30, 0
          %s382 = scalar_select %p381, %s30, 0
          %s383 = smul.addr %s382, 8
          %s384 = smul.addr %s383, 4
          %s385 = scalar_lea.vmem %s2, %s384
        $region24: #{moco_v2_forward.1} parent=11 // pred_fallthru
          _
        // Predicated region
        $region25: #{moco_v2_forward.1} parent=11 // pred_check
          %p386 = pneg %p127
        $region26: #{moco_v2_forward.1} parent=11 // pred_check_branch
          %388 = sbr.rel (%p386) target = $region28
        $region27: #{moco_v2_forward.1} parent=11 // pred_region
          _
        $region28: #{moco_v2_forward.1} parent=11 // pred_fallthru
          _
        // Predicated region
        $region29: #{moco_v2_forward.1} parent=11 // pred_check
          %p389 = pneg %p148
        $region30: #{moco_v2_forward.1} parent=11 // pred_check_branch
          %391 = sbr.rel (%p389) target = $region32
        $region31: #{moco_v2_forward.1} parent=11 // pred_region
          _
        $region32: #{moco_v2_forward.1} parent=11 // pred_fallthru
          _
        // Predicated region
        $region33: #{moco_v2_forward.1} parent=11 // pred_check
          %p392 = pneg %p169
        $region34: #{moco_v2_forward.1} parent=11 // pred_check_branch
          %394 = sbr.rel (%p392) target = $region36
        $region35: #{moco_v2_forward.1} parent=11 // pred_region
          _
        $region36: #{moco_v2_forward.1} parent=11 // pred_fallthru
          _
        // Predicated region
        $region37: #{moco_v2_forward.1} parent=11 // pred_check
          %p395 = pneg %p190
        $region38: #{moco_v2_forward.1} parent=11 // pred_check_branch
          %397 = sbr.rel (%p395) target = $region40
        $region39: #{moco_v2_forward.1} parent=11 // pred_region
          _
        $region40: #{moco_v2_forward.1} parent=11 // pred_fallthru
          _
        // Predicated region
        $region41: #{moco_v2_forward.1} parent=11 // pred_check
          %p398 = pneg %p211
        $region42: #{moco_v2_forward.1} parent=11 // pred_check_branch
          %400 = sbr.rel (%p398) target = $region44
        $region43: #{moco_v2_forward.1} parent=11 // pred_region
          _
        $region44: #{moco_v2_forward.1} parent=11 // pred_fallthru
          _
        // Predicated region
        $region45: #{moco_v2_forward.1} parent=11 // pred_check
          %p401 = pneg %p232
        $region46: #{moco_v2_forward.1} parent=11 // pred_check_branch
          %403 = sbr.rel (%p401) target = $region48
        $region47: #{moco_v2_forward.1} parent=11 // pred_region
          _
        $region48: #{moco_v2_forward.1} parent=11 // pred_fallthru
          _
        // Predicated region
        $region49: #{moco_v2_forward.1} parent=11 // pred_check
          %p404 = pneg %p253
        $region50: #{moco_v2_forward.1} parent=11 // pred_check_branch
          %406 = sbr.rel (%p404) target = $region52
        $region51: #{moco_v2_forward.1} parent=11 // pred_region
          _
        $region52: #{moco_v2_forward.1} parent=11 // pred_fallthru
          _
        // Predicated region
        $region53: #{moco_v2_forward.1} parent=11 // pred_check
          %p407 = pneg %p274
        $region54: #{moco_v2_forward.1} parent=11 // pred_check_branch
          %409 = sbr.rel (%p407) target = $region56
        $region55: #{moco_v2_forward.1} parent=11 // pred_region
          _
        $region56: #{moco_v2_forward.1} parent=11 // pred_fallthru
          _
      $region12: #{moco_v2_forward.1} parent=5 // pred_fallthru
        _
      %p410 = scmp.lt.s32.totalorder %s21, 4
      // Predicated region
      $region57: #{moco_v2_forward.1} parent=5 // pred_check
        %p411 = pneg %p410
      $region58: #{moco_v2_forward.1} parent=5 // pred_check_branch
        %413 = sbr.rel (%p411) target = $region60
      $region59: #{moco_v2_forward.1} parent=5 // pred_region
        // Predicated region
        $region61: #{moco_v2_forward.1} parent=59 // pred_check
          %p414 = pneg %p294
        $region62: #{moco_v2_forward.1} parent=59 // pred_check_branch
          %416 = sbr.rel (%p414) target = $region64
        $region63: #{moco_v2_forward.1} parent=59 // pred_region
          %s417 = sand.u32 %s284, 1
          %s418 = sand.u32 %s284, 1
          %s419 = smul.addr %s418, 64
          %s420 = scalar_lea.vmem [#allocation8], %s419
          %s421 = smul.addr %s29, 4
          %s422 = scalar_lea.vmem %s11, %s421
          // Predicated region
          $region65: #{moco_v2_forward.1} parent=63 // pred_check
            _
          $region66: #{moco_v2_forward.1} parent=63 // pred_check_branch
            %424 = sbr.rel (0) target = $region68
          $region67: #{moco_v2_forward.1} parent=63 // pred_region
            // Predicated region
            $region69: #{moco_v2_forward.1} parent=67 // pred_check
              _
            $region70: #{moco_v2_forward.1} parent=67 // pred_check_branch
              %426 = sbr.rel target = $region72
            $region71: #{moco_v2_forward.1} parent=67 // pred_region
              // Predicated region
              $region84: #{moco_v2_forward.1} parent=71 // pred_check
                _
              $region85: #{moco_v2_forward.1} parent=71 // pred_check_branch
                %471 = sbr.rel (0) target = $region87
              $region86: #{moco_v2_forward.1} parent=71 // pred_region
                loop: start=0, step=1, limit=1
                $region88: #{moco_v2_forward.1} parent=86 // loop_pre_header
                  _
                $region89: #{moco_v2_forward.1} parent=86 // loop_header
                  %s473 = sphi 0, %s477
                  %p474 = scmp.ge.s32.totalorder %s473, 1
                  %s478 = sphi %s422, %s422
                  %s479 = sphi %s420, %s420
                $region90: #{moco_v2_forward.1} parent=86 // loop_header_branch
                  %476 = sbr.rel (%p474) target = $region94
                $region91: #{moco_v2_forward.1} parent=86 // loop_body
                  _
                $region92: #{moco_v2_forward.1} parent=86 // loop_footer
                  %s477 = sadd.s32 1, %s473
                $region93: #{moco_v2_forward.1} parent=86 // loop_footer_branch
                  %472 = sbr.rel target = $region89
                $region94: #{moco_v2_forward.1} parent=86 // loop_exit
                  _
                loop: start=0, step=1, limit=1
                $region95: #{moco_v2_forward.1} parent=86 // loop_pre_header
                  _
                $region96: #{moco_v2_forward.1} parent=86 // loop_header
                  %s482 = sphi 0, %s486
                  %p483 = scmp.ge.s32.totalorder %s482, 1
                  %s487 = sphi %s422, %s422
                  %s488 = sphi %s420, %s420
                $region97: #{moco_v2_forward.1} parent=86 // loop_header_branch
                  %485 = sbr.rel (%p483) target = $region101
                $region98: #{moco_v2_forward.1} parent=86 // loop_body
                  %v489 = vld [vmem:[%s487] sm:$0xf]
                  %490 = vst [vmem:[%s488] sm:$0xf] %v489
                  %v491 = vld [vmem:[%s487 + $0x10] sm:$0xf]
                  %492 = vst [vmem:[%s488 + $0x4] sm:$0xf] %v491
                  %v493 = vld [vmem:[%s487 + $0x20] sm:$0xf]
                  %494 = vst [vmem:[%s488 + $0x8] sm:$0xf] %v493
                  %v495 = vld [vmem:[%s487 + $0x30] sm:$0xf]
                  %496 = vst [vmem:[%s488 + $0xc] sm:$0xf] %v495
                  %v497 = vld [vmem:[%s487 + $0x40] sm:$0xf]
                  %498 = vst [vmem:[%s488 + $0x10] sm:$0xf] %v497
                  %v499 = vld [vmem:[%s487 + $0x50] sm:$0xf]
                  %500 = vst [vmem:[%s488 + $0x14] sm:$0xf] %v499
                  %v501 = vld [vmem:[%s487 + $0x60] sm:$0xf]
                  %502 = vst [vmem:[%s488 + $0x18] sm:$0xf] %v501
                  %v503 = vld [vmem:[%s487 + $0x70] sm:$0xf]
                  %504 = vst [vmem:[%s488 + $0x1c] sm:$0xf] %v503
                  %v505 = vld [vmem:[%s487 + $0x80] sm:$0xf]
                  %506 = vst [vmem:[%s488 + $0x20] sm:$0xf] %v505
                  %v507 = vld [vmem:[%s487 + $0x90] sm:$0xf]
                  %508 = vst [vmem:[%s488 + $0x24] sm:$0xf] %v507
                  %v509 = vld [vmem:[%s487 + $0xa0] sm:$0xf]
                  %510 = vst [vmem:[%s488 + $0x28] sm:$0xf] %v509
                  %v511 = vld [vmem:[%s487 + $0xb0] sm:$0xf]
                  %512 = vst [vmem:[%s488 + $0x2c] sm:$0xf] %v511
                  %v513 = vld [vmem:[%s487 + $0xc0] sm:$0xf]
                  %514 = vst [vmem:[%s488 + $0x30] sm:$0xf] %v513
                  %v515 = vld [vmem:[%s487 + $0xd0] sm:$0xf]
                  %516 = vst [vmem:[%s488 + $0x34] sm:$0xf] %v515
                  %v517 = vld [vmem:[%s487 + $0xe0] sm:$0xf]
                  %518 = vst [vmem:[%s488 + $0x38] sm:$0xf] %v517
                  %v519 = vld [vmem:[%s487 + $0xf0] sm:$0xf]
                  %520 = vst [vmem:[%s488 + $0x3c] sm:$0xf] %v519
                $region99: #{moco_v2_forward.1} parent=86 // loop_footer
                  %s486 = sadd.s32 1, %s482
                $region100: #{moco_v2_forward.1} parent=86 // loop_footer_branch
                  %481 = sbr.rel target = $region96
                $region101: #{moco_v2_forward.1} parent=86 // loop_exit
                  _
              $region87: #{moco_v2_forward.1} parent=71 // pred_fallthru
                _
            $region72: #{moco_v2_forward.1} parent=67 // pred_fallthru
              _
            // Predicated region
            $region73: #{moco_v2_forward.1} parent=67 // pred_check
              _
            $region74: #{moco_v2_forward.1} parent=67 // pred_check_branch
              %428 = sbr.rel (0) target = $region76
            $region75: #{moco_v2_forward.1} parent=67 // pred_region
              loop: start=0, step=1, limit=1
              $region77: #{moco_v2_forward.1} parent=75 // loop_pre_header
                _
              $region78: #{moco_v2_forward.1} parent=75 // loop_header
                %s431 = sphi 0, %s435
                %p432 = scmp.ge.s32.totalorder %s431, 1
                %s436 = sphi %s422, %s422
                %s437 = sphi %s420, %s420
              $region79: #{moco_v2_forward.1} parent=75 // loop_header_branch
                %434 = sbr.rel (%p432) target = $region83
              $region80: #{moco_v2_forward.1} parent=75 // loop_body
                %v438 = vld [vmem:[%s436] sm:$0xf]
                %439 = vst [vmem:[%s437] sm:$0xf] %v438
                %v440 = vld [vmem:[%s436 + $0x10] sm:$0xf]
                %441 = vst [vmem:[%s437 + $0x4] sm:$0xf] %v440
                %v442 = vld [vmem:[%s436 + $0x20] sm:$0xf]
                %443 = vst [vmem:[%s437 + $0x8] sm:$0xf] %v442
                %v444 = vld [vmem:[%s436 + $0x30] sm:$0xf]
                %445 = vst [vmem:[%s437 + $0xc] sm:$0xf] %v444
                %v446 = vld [vmem:[%s436 + $0x40] sm:$0xf]
                %447 = vst [vmem:[%s437 + $0x10] sm:$0xf] %v446
                %v448 = vld [vmem:[%s436 + $0x50] sm:$0xf]
                %449 = vst [vmem:[%s437 + $0x14] sm:$0xf] %v448
                %v450 = vld [vmem:[%s436 + $0x60] sm:$0xf]
                %451 = vst [vmem:[%s437 + $0x18] sm:$0xf] %v450
                %v452 = vld [vmem:[%s436 + $0x70] sm:$0xf]
                %453 = vst [vmem:[%s437 + $0x1c] sm:$0xf] %v452
                %v454 = vld [vmem:[%s436 + $0x80] sm:$0xf]
                %455 = vst [vmem:[%s437 + $0x20] sm:$0xf] %v454
                %v456 = vld [vmem:[%s436 + $0x90] sm:$0xf]
                %457 = vst [vmem:[%s437 + $0x24] sm:$0xf] %v456
                %v458 = vld [vmem:[%s436 + $0xa0] sm:$0xf]
                %459 = vst [vmem:[%s437 + $0x28] sm:$0xf] %v458
                %v460 = vld [vmem:[%s436 + $0xb0] sm:$0xf]
                %461 = vst [vmem:[%s437 + $0x2c] sm:$0xf] %v460
                %v462 = vld [vmem:[%s436 + $0xc0] sm:$0xf]
                %463 = vst [vmem:[%s437 + $0x30] sm:$0xf] %v462
                %v464 = vld [vmem:[%s436 + $0xd0] sm:$0xf]
                %465 = vst [vmem:[%s437 + $0x34] sm:$0xf] %v464
                %v466 = vld [vmem:[%s436 + $0xe0] sm:$0xf]
                %467 = vst [vmem:[%s437 + $0x38] sm:$0xf] %v466
                %v468 = vld [vmem:[%s436 + $0xf0] sm:$0xf]
                %469 = vst [vmem:[%s437 + $0x3c] sm:$0xf] %v468
              $region81: #{moco_v2_forward.1} parent=75 // loop_footer
                %s435 = sadd.s32 1, %s431
              $region82: #{moco_v2_forward.1} parent=75 // loop_footer_branch
                %430 = sbr.rel target = $region78
              $region83: #{moco_v2_forward.1} parent=75 // loop_exit
                _
            $region76: #{moco_v2_forward.1} parent=67 // pred_fallthru
              _
          $region68: #{moco_v2_forward.1} parent=63 // pred_fallthru
            _
          %521 = vnop
        $region64: #{moco_v2_forward.1} parent=59 // pred_fallthru
          _
      $region60: #{moco_v2_forward.1} parent=5 // pred_fallthru
        _
      %p522 = scmp.le.s32.totalorder 1, %s21
      %p523 = scmp.lt.s32.totalorder %s21, 5
      %p524 = pnand %p522, %p523
      %p525 = pneg %p524
      // Predicated region
      $region102: #{moco_v2_forward.1} parent=5 // pred_check
        _
      $region103: #{moco_v2_forward.1} parent=5 // pred_check_branch
        %527 = sbr.rel (%p524) target = $region105
      $region104: #{moco_v2_forward.1} parent=5 // pred_region
        %s528 = ssub.s32 %s21, 1
        %s529 = sand.u32 %s287, 1
        %s530 = sand.u32 %s287, 1
        %s531 = smul.addr %s530, 64
        %s532 = scalar_lea.vmem [#allocation8], %s531
        // Predicated region
        $region106: #{moco_v2_forward.1} parent=104 // pred_check
          %p533 = pneg %p300
        $region107: #{moco_v2_forward.1} parent=104 // pred_check_branch
          %535 = sbr.rel (%p533) target = $region109
        $region108: #{moco_v2_forward.1} parent=104 // pred_region
          _
        $region109: #{moco_v2_forward.1} parent=104 // pred_fallthru
          _
        %p536 = pneg %p54
        %p537 = pneg %p51
        %p538 = scmp.lt.s32.totalorder %s30, 0
        %s539 = scalar_select %p538, %s30, 0
        %s540 = smul.addr %s539, 8
        %s541 = smul.addr %s540, 4
        %s542 = scalar_lea.vmem %s1, %s541
        %p543 = pneg %p80
        %p544 = pneg %p77
        %p545 = scmp.lt.s32.totalorder %s30, 0
        %s546 = scalar_select %p545, %s30, 0
        %s547 = smul.addr %s546, 8
        %s548 = smul.addr %s547, 4
        %s549 = scalar_lea.vmem %s2, %s548
        %p550 = pneg %p106
        %p551 = pneg %p103
        %p552 = pneg %p127
        %p553 = pneg %p124
        %p554 = pneg %p148
        %p555 = pneg %p145
        %p556 = pneg %p169
        %p557 = pneg %p166
        %p558 = pneg %p190
        %p559 = pneg %p187
        %p560 = pneg %p211
        %p561 = pneg %p208
        %p562 = pneg %p232
        %p563 = pneg %p229
        %p564 = pneg %p253
        %p565 = pneg %p250
        %p566 = pneg %p274
        %p567 = pneg %p271
        %s568 = sand.u32 %s287, 1
        %s569 = sand.u32 %s287, 1
        %s570 = smul.addr %s569, 64
        %s571 = scalar_lea.vmem [#allocation8], %s570
        %p572 = pneg %p300
        %p573 = pneg %p297
        %p574 = pneg %p326
        %p575 = pneg %p323
        %p576 = scmp.lt.s32.totalorder %s30, 0
        %s577 = scalar_select %p576, %s30, 0
        %s578 = smul.addr %s577, 8
        %s579 = scalar_lea.vmem %s12, %s578
        %p580 = pneg %p352
        %p581 = pneg %p349
        %p582 = scmp.lt.s32.totalorder %s30, 0
        %s583 = scalar_select %p582, %s30, 0
        %s584 = smul.addr %s583, 8
        %s585 = scalar_lea.vmem %s13, %s584
        %p586 = scmp.lt.s32.totalorder %s30, 0
        %s587 = scalar_select %p586, %s30, 0
        %s588 = smul.addr %s587, 8
        %s589 = smul.addr %s588, 4
        %s590 = scalar_lea.vmem %s1, %s589
        %p591 = scmp.lt.s32.totalorder %s30, 0
        %s592 = scalar_select %p591, %s30, 0
        %s593 = smul.addr %s592, 8
        %s594 = smul.addr %s593, 4
        %s595 = scalar_lea.vmem %s2, %s594
        %p596 = scmp.lt.s32.totalorder %s30, 0
        %s597 = scalar_select %p596, %s30, 0
        %s598 = smul.addr %s597, 8
        %s599 = scalar_lea.vmem %s12, %s598
        %p600 = scmp.lt.s32.totalorder %s30, 0
        %s601 = scalar_select %p600, %s30, 0
        %s602 = smul.addr %s601, 8
        %s603 = scalar_lea.vmem %s13, %s602
        %s605 = sld [smem:[#allocation7]]
        %p606 = scmp.eq.s32.totalorder %s31, 0
        // Predicated region
        $region110: #{moco_v2_forward.1} parent=104 // pred_check
          %p607 = pneg %p606
        $region111: #{moco_v2_forward.1} parent=104 // pred_check_branch
          %609 = sbr.rel (%p607) target = $region113
        $region112: #{moco_v2_forward.1} parent=104 // pred_region
          %v610 = vld [vmem:[%s590] sm:$0xff]
          %v611 = vld [vmem:[%s590 + $0x8] sm:$0xff]
          %v612 = vld [vmem:[%s590 + $0x10] sm:$0xff]
          %v613 = vld [vmem:[%s590 + $0x18] sm:$0xff]
          %v614 = vld [vmem:[%s3] sm:$0xf]
          %v615 = vld [vmem:[%s3 + $0x4] sm:$0xf]
          %v616 = vld [vmem:[%s3 + $0x8] sm:$0xf]
          %v617 = vld [vmem:[%s3 + $0xc] sm:$0xf]
          %v618 = vld [vmem:[%s3 + $0x10] sm:$0xf]
          %v619 = vld [vmem:[%s3 + $0x14] sm:$0xf]
          %v620 = vld [vmem:[%s3 + $0x18] sm:$0xf]
          %v621 = vld [vmem:[%s3 + $0x1c] sm:$0xf]
          %v622 = vld [vmem:[%s3 + $0x20] sm:$0xf]
          %v623 = vld [vmem:[%s3 + $0x24] sm:$0xf]
          %v624 = vld [vmem:[%s3 + $0x28] sm:$0xf]
          %v625 = vld [vmem:[%s3 + $0x2c] sm:$0xf]
          %v626 = vld [vmem:[%s3 + $0x30] sm:$0xf]
          %v627 = vld [vmem:[%s3 + $0x34] sm:$0xf]
          %v628 = vld [vmem:[%s3 + $0x38] sm:$0xf]
          %v629 = vld [vmem:[%s3 + $0x3c] sm:$0xf]
          %v630 = vld [vmem:[%s3 + $0x40] sm:$0xf]
          %v631 = vld [vmem:[%s3 + $0x44] sm:$0xf]
          %v632 = vld [vmem:[%s3 + $0x48] sm:$0xf]
          %v633 = vld [vmem:[%s3 + $0x4c] sm:$0xf]
          %v634 = vld [vmem:[%s3 + $0x50] sm:$0xf]
          %v635 = vld [vmem:[%s3 + $0x54] sm:$0xf]
          %v636 = vld [vmem:[%s3 + $0x58] sm:$0xf]
          %v637 = vld [vmem:[%s3 + $0x5c] sm:$0xf]
          %v638 = vld [vmem:[%s3 + $0x60] sm:$0xf]
          %v639 = vld [vmem:[%s3 + $0x64] sm:$0xf]
          %v640 = vld [vmem:[%s3 + $0x68] sm:$0xf]
          %v641 = vld [vmem:[%s3 + $0x6c] sm:$0xf]
          %v642 = vld [vmem:[%s3 + $0x70] sm:$0xf]
          %v643 = vld [vmem:[%s3 + $0x74] sm:$0xf]
          %v644 = vld [vmem:[%s3 + $0x78] sm:$0xf]
          %v645 = vld [vmem:[%s3 + $0x7c] sm:$0xf]
          %v646 = vld [vmem:[%s3 + $0x80] sm:$0xf]
          %v647 = vld [vmem:[%s3 + $0x84] sm:$0xf]
          %v648 = vld [vmem:[%s3 + $0x88] sm:$0xf]
          %v649 = vld [vmem:[%s3 + $0x8c] sm:$0xf]
          %v650 = vld [vmem:[%s3 + $0x90] sm:$0xf]
          %v651 = vld [vmem:[%s3 + $0x94] sm:$0xf]
          %v652 = vld [vmem:[%s3 + $0x98] sm:$0xf]
          %v653 = vld [vmem:[%s3 + $0x9c] sm:$0xf]
          %v654 = vld [vmem:[%s3 + $0xa0] sm:$0xf]
          %v655 = vld [vmem:[%s3 + $0xa4] sm:$0xf]
          %v656 = vld [vmem:[%s3 + $0xa8] sm:$0xf]
          %v657 = vld [vmem:[%s3 + $0xac] sm:$0xf]
          %v658 = vld [vmem:[%s3 + $0xb0] sm:$0xf]
          %v659 = vld [vmem:[%s3 + $0xb4] sm:$0xf]
          %v660 = vld [vmem:[%s3 + $0xb8] sm:$0xf]
          %v661 = vld [vmem:[%s3 + $0xbc] sm:$0xf]
          %v662 = vld [vmem:[%s3 + $0xc0] sm:$0xf]
          %v663 = vld [vmem:[%s3 + $0xc4] sm:$0xf]
          %v664 = vld [vmem:[%s3 + $0xc8] sm:$0xf]
          %v665 = vld [vmem:[%s3 + $0xcc] sm:$0xf]
          %v666 = vld [vmem:[%s3 + $0xd0] sm:$0xf]
          %v667 = vld [vmem:[%s3 + $0xd4] sm:$0xf]
          %v668 = vld [vmem:[%s3 + $0xd8] sm:$0xf]
          %v669 = vld [vmem:[%s3 + $0xdc] sm:$0xf]
          %v670 = vld [vmem:[%s3 + $0xe0] sm:$0xf]
          %v671 = vld [vmem:[%s3 + $0xe4] sm:$0xf]
          %v672 = vld [vmem:[%s3 + $0xe8] sm:$0xf]
          %v673 = vld [vmem:[%s3 + $0xec] sm:$0xf]
          %v674 = vld [vmem:[%s3 + $0xf0] sm:$0xf]
          %v675 = vld [vmem:[%s3 + $0xf4] sm:$0xf]
          %v676 = vld [vmem:[%s3 + $0xf8] sm:$0xf]
          %v677 = vld [vmem:[%s3 + $0xfc] sm:$0xf]
          %v678 = vld [vmem:[%s3 + $0x100] sm:$0xf]
          %v679 = vld [vmem:[%s3 + $0x104] sm:$0xf]
          %v680 = vld [vmem:[%s3 + $0x108] sm:$0xf]
          %v681 = vld [vmem:[%s3 + $0x10c] sm:$0xf]
          %v682 = vld [vmem:[%s3 + $0x110] sm:$0xf]
          %v683 = vld [vmem:[%s3 + $0x114] sm:$0xf]
          %v684 = vld [vmem:[%s3 + $0x118] sm:$0xf]
          %v685 = vld [vmem:[%s3 + $0x11c] sm:$0xf]
          %v686 = vld [vmem:[%s3 + $0x120] sm:$0xf]
          %v687 = vld [vmem:[%s3 + $0x124] sm:$0xf]
          %v688 = vld [vmem:[%s3 + $0x128] sm:$0xf]
          %v689 = vld [vmem:[%s3 + $0x12c] sm:$0xf]
          %v690 = vld [vmem:[%s3 + $0x130] sm:$0xf]
          %v691 = vld [vmem:[%s3 + $0x134] sm:$0xf]
          %v692 = vld [vmem:[%s3 + $0x138] sm:$0xf]
          %v693 = vld [vmem:[%s3 + $0x13c] sm:$0xf]
          %v694 = vld [vmem:[%s3 + $0x140] sm:$0xf]
          %v695 = vld [vmem:[%s3 + $0x144] sm:$0xf]
          %v696 = vld [vmem:[%s3 + $0x148] sm:$0xf]
          %v697 = vld [vmem:[%s3 + $0x14c] sm:$0xf]
          %v698 = vld [vmem:[%s3 + $0x150] sm:$0xf]
          %v699 = vld [vmem:[%s3 + $0x154] sm:$0xf]
          %v700 = vld [vmem:[%s3 + $0x158] sm:$0xf]
          %v701 = vld [vmem:[%s3 + $0x15c] sm:$0xf]
          %v702 = vld [vmem:[%s3 + $0x160] sm:$0xf]
          %v703 = vld [vmem:[%s3 + $0x164] sm:$0xf]
          %v704 = vld [vmem:[%s3 + $0x168] sm:$0xf]
          %v705 = vld [vmem:[%s3 + $0x16c] sm:$0xf]
          %v706 = vld [vmem:[%s3 + $0x170] sm:$0xf]
          %v707 = vld [vmem:[%s3 + $0x174] sm:$0xf]
          %v708 = vld [vmem:[%s3 + $0x178] sm:$0xf]
          %v709 = vld [vmem:[%s3 + $0x17c] sm:$0xf]
          %v710 = vld [vmem:[%s3 + $0x180] sm:$0xf]
          %v711 = vld [vmem:[%s3 + $0x184] sm:$0xf]
          %v712 = vld [vmem:[%s3 + $0x188] sm:$0xf]
          %v713 = vld [vmem:[%s3 + $0x18c] sm:$0xf]
          %v714 = vld [vmem:[%s3 + $0x190] sm:$0xf]
          %v715 = vld [vmem:[%s3 + $0x194] sm:$0xf]
          %v716 = vld [vmem:[%s3 + $0x198] sm:$0xf]
          %v717 = vld [vmem:[%s3 + $0x19c] sm:$0xf]
          %v718 = vld [vmem:[%s3 + $0x1a0] sm:$0xf]
          %v719 = vld [vmem:[%s3 + $0x1a4] sm:$0xf]
          %v720 = vld [vmem:[%s3 + $0x1a8] sm:$0xf]
          %v721 = vld [vmem:[%s3 + $0x1ac] sm:$0xf]
          %v722 = vld [vmem:[%s3 + $0x1b0] sm:$0xf]
          %v723 = vld [vmem:[%s3 + $0x1b4] sm:$0xf]
          %v724 = vld [vmem:[%s3 + $0x1b8] sm:$0xf]
          %v725 = vld [vmem:[%s3 + $0x1bc] sm:$0xf]
          %v726 = vld [vmem:[%s3 + $0x1c0] sm:$0xf]
          %v727 = vld [vmem:[%s3 + $0x1c4] sm:$0xf]
          %v728 = vld [vmem:[%s3 + $0x1c8] sm:$0xf]
          %v729 = vld [vmem:[%s3 + $0x1cc] sm:$0xf]
          %v730 = vld [vmem:[%s3 + $0x1d0] sm:$0xf]
          %v731 = vld [vmem:[%s3 + $0x1d4] sm:$0xf]
          %v732 = vld [vmem:[%s3 + $0x1d8] sm:$0xf]
          %v733 = vld [vmem:[%s3 + $0x1dc] sm:$0xf]
          %v734 = vld [vmem:[%s3 + $0x1e0] sm:$0xf]
          %v735 = vld [vmem:[%s3 + $0x1e4] sm:$0xf]
          %v736 = vld [vmem:[%s3 + $0x1e8] sm:$0xf]
          %v737 = vld [vmem:[%s3 + $0x1ec] sm:$0xf]
          %v738 = vld [vmem:[%s3 + $0x1f0] sm:$0xf]
          %v739 = vld [vmem:[%s3 + $0x1f4] sm:$0xf]
          %v740 = vld [vmem:[%s3 + $0x1f8] sm:$0xf]
          %v741 = vld [vmem:[%s3 + $0x1fc] sm:$0xf]
          %v742 = vld [vmem:[%s4] sm:$0x1]
          %v744 = vlaneseq
          %v745 = vshrl.u32 %v744, 7
          %v746 = vsub.s32 0, %v745
          %v747 = vrot.slane %v742, %v746
          %v753 = vunpack.c.l.b16 %v610
          %v754 = vunpack.c.h.b16 %v610
          %v755 = vunpack.c.l.b16 %v611
          %v756 = vunpack.c.h.b16 %v611
          %v757 = vunpack.c.l.b16 %v612
          %v758 = vunpack.c.h.b16 %v612
          %v759 = vunpack.c.l.b16 %v613
          %v760 = vunpack.c.h.b16 %v613
          %v761 = vpack.c.b16 %v753, %v753
          %v762 = vpack.c.b16 %v754, %v754
          %v763 = vpack.c.b16 %v755, %v755
          %v764 = vpack.c.b16 %v756, %v756
          %v765 = vpack.c.b16 %v757, %v757
          %v766 = vpack.c.b16 %v758, %v758
          %v767 = vpack.c.b16 %v759, %v759
          %v768 = vpack.c.b16 %v760, %v760
          %v905 = vunpack.c.l.b16 %v614
          %v906 = vunpack.c.l.b16 %v615
          %v907 = vunpack.c.l.b16 %v616
          %v908 = vunpack.c.l.b16 %v617
          %v909 = vunpack.c.l.b16 %v618
          %v910 = vunpack.c.l.b16 %v619
          %v911 = vunpack.c.l.b16 %v620
          %v912 = vunpack.c.l.b16 %v621
          %v913 = vunpack.c.l.b16 %v622
          %v914 = vunpack.c.l.b16 %v623
          %v915 = vunpack.c.l.b16 %v624
          %v916 = vunpack.c.l.b16 %v625
          %v917 = vunpack.c.l.b16 %v626
          %v918 = vunpack.c.l.b16 %v627
          %v919 = vunpack.c.l.b16 %v628
          %v920 = vunpack.c.l.b16 %v629
          %v921 = vunpack.c.l.b16 %v630
          %v922 = vunpack.c.l.b16 %v631
          %v923 = vunpack.c.l.b16 %v632
          %v924 = vunpack.c.l.b16 %v633
          %v925 = vunpack.c.l.b16 %v634
          %v926 = vunpack.c.l.b16 %v635
          %v927 = vunpack.c.l.b16 %v636
          %v928 = vunpack.c.l.b16 %v637
          %v929 = vunpack.c.l.b16 %v638
          %v930 = vunpack.c.l.b16 %v639
          %v931 = vunpack.c.l.b16 %v640
          %v932 = vunpack.c.l.b16 %v641
          %v933 = vunpack.c.l.b16 %v642
          %v934 = vunpack.c.l.b16 %v643
          %v935 = vunpack.c.l.b16 %v644
          %v936 = vunpack.c.l.b16 %v645
          %v937 = vunpack.c.l.b16 %v646
          %v938 = vunpack.c.l.b16 %v647
          %v939 = vunpack.c.l.b16 %v648
          %v940 = vunpack.c.l.b16 %v649
          %v941 = vunpack.c.l.b16 %v650
          %v942 = vunpack.c.l.b16 %v651
          %v943 = vunpack.c.l.b16 %v652
          %v944 = vunpack.c.l.b16 %v653
          %v945 = vunpack.c.l.b16 %v654
          %v946 = vunpack.c.l.b16 %v655
          %v947 = vunpack.c.l.b16 %v656
          %v948 = vunpack.c.l.b16 %v657
          %v949 = vunpack.c.l.b16 %v658
          %v950 = vunpack.c.l.b16 %v659
          %v951 = vunpack.c.l.b16 %v660
          %v952 = vunpack.c.l.b16 %v661
          %v953 = vunpack.c.l.b16 %v662
          %v954 = vunpack.c.l.b16 %v663
          %v955 = vunpack.c.l.b16 %v664
          %v956 = vunpack.c.l.b16 %v665
          %v957 = vunpack.c.l.b16 %v666
          %v958 = vunpack.c.l.b16 %v667
          %v959 = vunpack.c.l.b16 %v668
          %v960 = vunpack.c.l.b16 %v669
          %v961 = vunpack.c.l.b16 %v670
          %v962 = vunpack.c.l.b16 %v671
          %v963 = vunpack.c.l.b16 %v672
          %v964 = vunpack.c.l.b16 %v673
          %v965 = vunpack.c.l.b16 %v674
          %v966 = vunpack.c.l.b16 %v675
          %v967 = vunpack.c.l.b16 %v676
          %v968 = vunpack.c.l.b16 %v677
          %v969 = vunpack.c.l.b16 %v678
          %v970 = vunpack.c.l.b16 %v679
          %v971 = vunpack.c.l.b16 %v680
          %v972 = vunpack.c.l.b16 %v681
          %v973 = vunpack.c.l.b16 %v682
          %v974 = vunpack.c.l.b16 %v683
          %v975 = vunpack.c.l.b16 %v684
          %v976 = vunpack.c.l.b16 %v685
          %v977 = vunpack.c.l.b16 %v686
          %v978 = vunpack.c.l.b16 %v687
          %v979 = vunpack.c.l.b16 %v688
          %v980 = vunpack.c.l.b16 %v689
          %v981 = vunpack.c.l.b16 %v690
          %v982 = vunpack.c.l.b16 %v691
          %v983 = vunpack.c.l.b16 %v692
          %v984 = vunpack.c.l.b16 %v693
          %v985 = vunpack.c.l.b16 %v694
          %v986 = vunpack.c.l.b16 %v695
          %v987 = vunpack.c.l.b16 %v696
          %v988 = vunpack.c.l.b16 %v697
          %v989 = vunpack.c.l.b16 %v698
          %v990 = vunpack.c.l.b16 %v699
          %v991 = vunpack.c.l.b16 %v700
          %v992 = vunpack.c.l.b16 %v701
          %v993 = vunpack.c.l.b16 %v702
          %v994 = vunpack.c.l.b16 %v703
          %v995 = vunpack.c.l.b16 %v704
          %v996 = vunpack.c.l.b16 %v705
          %v997 = vunpack.c.l.b16 %v706
          %v998 = vunpack.c.l.b16 %v707
          %v999 = vunpack.c.l.b16 %v708
          %v1000 = vunpack.c.l.b16 %v709
          %v1001 = vunpack.c.l.b16 %v710
          %v1002 = vunpack.c.l.b16 %v711
          %v1003 = vunpack.c.l.b16 %v712
          %v1004 = vunpack.c.l.b16 %v713
          %v1005 = vunpack.c.l.b16 %v714
          %v1006 = vunpack.c.l.b16 %v715
          %v1007 = vunpack.c.l.b16 %v716
          %v1008 = vunpack.c.l.b16 %v717
          %v1009 = vunpack.c.l.b16 %v718
          %v1010 = vunpack.c.l.b16 %v719
          %v1011 = vunpack.c.l.b16 %v720
          %v1012 = vunpack.c.l.b16 %v721
          %v1013 = vunpack.c.l.b16 %v722
          %v1014 = vunpack.c.l.b16 %v723
          %v1015 = vunpack.c.l.b16 %v724
          %v1016 = vunpack.c.l.b16 %v725
          %v1017 = vunpack.c.l.b16 %v726
          %v1018 = vunpack.c.l.b16 %v727
          %v1019 = vunpack.c.l.b16 %v728
          %v1020 = vunpack.c.l.b16 %v729
          %v1021 = vunpack.c.l.b16 %v730
          %v1022 = vunpack.c.l.b16 %v731
          %v1023 = vunpack.c.l.b16 %v732
          %v1024 = vunpack.c.l.b16 %v733
          %v1025 = vunpack.c.l.b16 %v734
          %v1026 = vunpack.c.l.b16 %v735
          %v1027 = vunpack.c.l.b16 %v736
          %v1028 = vunpack.c.l.b16 %v737
          %v1029 = vunpack.c.l.b16 %v738
          %v1030 = vunpack.c.l.b16 %v739
          %v1031 = vunpack.c.l.b16 %v740
          %v1032 = vunpack.c.l.b16 %v741
          %v1033 = vpack.c.b16 %v906, %v905
          %v1034 = vpack.c.b16 %v908, %v907
          %v1035 = vpack.c.b16 %v910, %v909
          %v1036 = vpack.c.b16 %v912, %v911
          %v1037 = vpack.c.b16 %v914, %v913
          %v1038 = vpack.c.b16 %v916, %v915
          %v1039 = vpack.c.b16 %v918, %v917
          %v1040 = vpack.c.b16 %v920, %v919
          %v1041 = vpack.c.b16 %v922, %v921
          %v1042 = vpack.c.b16 %v924, %v923
          %v1043 = vpack.c.b16 %v926, %v925
          %v1044 = vpack.c.b16 %v928, %v927
          %v1045 = vpack.c.b16 %v930, %v929
          %v1046 = vpack.c.b16 %v932, %v931
          %v1047 = vpack.c.b16 %v934, %v933
          %v1048 = vpack.c.b16 %v936, %v935
          %v1049 = vpack.c.b16 %v938, %v937
          %v1050 = vpack.c.b16 %v940, %v939
          %v1051 = vpack.c.b16 %v942, %v941
          %v1052 = vpack.c.b16 %v944, %v943
          %v1053 = vpack.c.b16 %v946, %v945
          %v1054 = vpack.c.b16 %v948, %v947
          %v1055 = vpack.c.b16 %v950, %v949
          %v1056 = vpack.c.b16 %v952, %v951
          %v1057 = vpack.c.b16 %v954, %v953
          %v1058 = vpack.c.b16 %v956, %v955
          %v1059 = vpack.c.b16 %v958, %v957
          %v1060 = vpack.c.b16 %v960, %v959
          %v1061 = vpack.c.b16 %v962, %v961
          %v1062 = vpack.c.b16 %v964, %v963
          %v1063 = vpack.c.b16 %v966, %v965
          %v1064 = vpack.c.b16 %v968, %v967
          %v1065 = vpack.c.b16 %v970, %v969
          %v1066 = vpack.c.b16 %v972, %v971
          %v1067 = vpack.c.b16 %v974, %v973
          %v1068 = vpack.c.b16 %v976, %v975
          %v1069 = vpack.c.b16 %v978, %v977
          %v1070 = vpack.c.b16 %v980, %v979
          %v1071 = vpack.c.b16 %v982, %v981
          %v1072 = vpack.c.b16 %v984, %v983
          %v1073 = vpack.c.b16 %v986, %v985
          %v1074 = vpack.c.b16 %v988, %v987
          %v1075 = vpack.c.b16 %v990, %v989
          %v1076 = vpack.c.b16 %v992, %v991
          %v1077 = vpack.c.b16 %v994, %v993
          %v1078 = vpack.c.b16 %v996, %v995
          %v1079 = vpack.c.b16 %v998, %v997
          %v1080 = vpack.c.b16 %v1000, %v999
          %v1081 = vpack.c.b16 %v1002, %v1001
          %v1082 = vpack.c.b16 %v1004, %v1003
          %v1083 = vpack.c.b16 %v1006, %v1005
          %v1084 = vpack.c.b16 %v1008, %v1007
          %v1085 = vpack.c.b16 %v1010, %v1009
          %v1086 = vpack.c.b16 %v1012, %v1011
          %v1087 = vpack.c.b16 %v1014, %v1013
          %v1088 = vpack.c.b16 %v1016, %v1015
          %v1089 = vpack.c.b16 %v1018, %v1017
          %v1090 = vpack.c.b16 %v1020, %v1019
          %v1091 = vpack.c.b16 %v1022, %v1021
          %v1092 = vpack.c.b16 %v1024, %v1023
          %v1093 = vpack.c.b16 %v1026, %v1025
          %v1094 = vpack.c.b16 %v1028, %v1027
          %v1095 = vpack.c.b16 %v1030, %v1029
          %v1096 = vpack.c.b16 %v1032, %v1031
          %1161 = vmatprep.subr.bf16.mxu0 0
          %1162 = vmatpush1.bf16.msra.mxu0 %v1033
          %1163 = vmatprep.subr.bf16.mxu0 0
          %1164 = vmatpush1.bf16.msra.mxu0 %v1034
          %1165 = vmatprep.subr.bf16.mxu0 0
          %1166 = vmatpush1.bf16.msra.mxu0 %v1035
          %1167 = vmatprep.subr.bf16.mxu0 0
          %1168 = vmatpush1.bf16.msra.mxu0 %v1036
          %1169 = vmatprep.subr.bf16.mxu0 0
          %1170 = vmatpush1.bf16.msra.mxu0 %v1037
          %1171 = vmatprep.subr.bf16.mxu0 0
          %1172 = vmatpush1.bf16.msra.mxu0 %v1038
          %1173 = vmatprep.subr.bf16.mxu0 0
          %1174 = vmatpush1.bf16.msra.mxu0 %v1039
          %1175 = vmatprep.subr.bf16.mxu0 0
          %1176 = vmatpush1.bf16.msra.mxu0 %v1040
          %1177 = vmatprep.subr.bf16.mxu0 0
          %1178 = vmatpush1.bf16.msra.mxu0 %v1041
          %1179 = vmatprep.subr.bf16.mxu0 0
          %1180 = vmatpush1.bf16.msra.mxu0 %v1042
          %1181 = vmatprep.subr.bf16.mxu0 0
          %1182 = vmatpush1.bf16.msra.mxu0 %v1043
          %1183 = vmatprep.subr.bf16.mxu0 0
          %1184 = vmatpush1.bf16.msra.mxu0 %v1044
          %1185 = vmatprep.subr.bf16.mxu0 0
          %1186 = vmatpush1.bf16.msra.mxu0 %v1045
          %1187 = vmatprep.subr.bf16.mxu0 0
          %1188 = vmatpush1.bf16.msra.mxu0 %v1046
          %1189 = vmatprep.subr.bf16.mxu0 0
          %1190 = vmatpush1.bf16.msra.mxu0 %v1047
          %1191 = vmatprep.subr.bf16.mxu0 0
          %1192 = vmatpush1.bf16.msra.mxu0 %v1048
          %1193 = vmatprep.mubr.bf16.mxu0 %v762
          %1194 = vmatmul.mubr.bf16.gmra.mrb[0].mxu0 %v761
          %v1195 = vpop.f32.mrb[0].mxu0
          %v1196 = vadd.f32 %v747, %v1195
          %v1197 = vpop.f32.mrb[0].mxu0
          %v1198 = vpop.f32.mrb[0].mxu0
          %v1199 = vpop.f32.mrb[0].mxu0
          %1200 = vdwg.mxu0
          %1201 = vmatprep.subr.bf16.mxu0 0
          %1202 = vmatpush1.bf16.msra.mxu0 %v1049
          %1203 = vmatprep.subr.bf16.mxu0 0
          %1204 = vmatpush1.bf16.msra.mxu0 %v1050
          %1205 = vmatprep.subr.bf16.mxu0 0
          %1206 = vmatpush1.bf16.msra.mxu0 %v1051
          %1207 = vmatprep.subr.bf16.mxu0 0
          %1208 = vmatpush1.bf16.msra.mxu0 %v1052
          %1209 = vmatprep.subr.bf16.mxu0 0
          %1210 = vmatpush1.bf16.msra.mxu0 %v1053
          %1211 = vmatprep.subr.bf16.mxu0 0
          %1212 = vmatpush1.bf16.msra.mxu0 %v1054
          %1213 = vmatprep.subr.bf16.mxu0 0
          %1214 = vmatpush1.bf16.msra.mxu0 %v1055
          %1215 = vmatprep.subr.bf16.mxu0 0
          %1216 = vmatpush1.bf16.msra.mxu0 %v1056
          %1217 = vmatprep.subr.bf16.mxu0 0
          %1218 = vmatpush1.bf16.msra.mxu0 %v1057
          %1219 = vmatprep.subr.bf16.mxu0 0
          %1220 = vmatpush1.bf16.msra.mxu0 %v1058
          %1221 = vmatprep.subr.bf16.mxu0 0
          %1222 = vmatpush1.bf16.msra.mxu0 %v1059
          %1223 = vmatprep.subr.bf16.mxu0 0
          %1224 = vmatpush1.bf16.msra.mxu0 %v1060
          %1225 = vmatprep.subr.bf16.mxu0 0
          %1226 = vmatpush1.bf16.msra.mxu0 %v1061
          %1227 = vmatprep.subr.bf16.mxu0 0
          %1228 = vmatpush1.bf16.msra.mxu0 %v1062
          %1229 = vmatprep.subr.bf16.mxu0 0
          %1230 = vmatpush1.bf16.msra.mxu0 %v1063
          %1231 = vmatprep.subr.bf16.mxu0 0
          %1232 = vmatpush1.bf16.msra.mxu0 %v1064
          %1233 = vmatprep.mubr.bf16.mxu0 %v764
          %1234 = vmatmul.mubr.bf16.gmra.mrb[0].mxu0 %v763
          %v1235 = vpop.f32.mrb[0].mxu0
          %v1236 = vadd.f32 %v1196, %v1235
          %v1237 = vpop.f32.mrb[0].mxu0
          %v1238 = vpop.f32.mrb[0].mxu0
          %v1239 = vpop.f32.mrb[0].mxu0
          %1240 = vdwg.mxu0
          %1241 = vmatprep.subr.bf16.mxu0 0
          %1242 = vmatpush1.bf16.msra.mxu0 %v1065
          %1243 = vmatprep.subr.bf16.mxu0 0
          %1244 = vmatpush1.bf16.msra.mxu0 %v1066
          %1245 = vmatprep.subr.bf16.mxu0 0
          %1246 = vmatpush1.bf16.msra.mxu0 %v1067
          %1247 = vmatprep.subr.bf16.mxu0 0
          %1248 = vmatpush1.bf16.msra.mxu0 %v1068
          %1249 = vmatprep.subr.bf16.mxu0 0
          %1250 = vmatpush1.bf16.msra.mxu0 %v1069
          %1251 = vmatprep.subr.bf16.mxu0 0
          %1252 = vmatpush1.bf16.msra.mxu0 %v1070
          %1253 = vmatprep.subr.bf16.mxu0 0
          %1254 = vmatpush1.bf16.msra.mxu0 %v1071
          %1255 = vmatprep.subr.bf16.mxu0 0
          %1256 = vmatpush1.bf16.msra.mxu0 %v1072
          %1257 = vmatprep.subr.bf16.mxu0 0
          %1258 = vmatpush1.bf16.msra.mxu0 %v1073
          %1259 = vmatprep.subr.bf16.mxu0 0
          %1260 = vmatpush1.bf16.msra.mxu0 %v1074
          %1261 = vmatprep.subr.bf16.mxu0 0
          %1262 = vmatpush1.bf16.msra.mxu0 %v1075
          %1263 = vmatprep.subr.bf16.mxu0 0
          %1264 = vmatpush1.bf16.msra.mxu0 %v1076
          %1265 = vmatprep.subr.bf16.mxu0 0
          %1266 = vmatpush1.bf16.msra.mxu0 %v1077
          %1267 = vmatprep.subr.bf16.mxu0 0
          %1268 = vmatpush1.bf16.msra.mxu0 %v1078
          %1269 = vmatprep.subr.bf16.mxu0 0
          %1270 = vmatpush1.bf16.msra.mxu0 %v1079
          %1271 = vmatprep.subr.bf16.mxu0 0
          %1272 = vmatpush1.bf16.msra.mxu0 %v1080
          %1273 = vmatprep.mubr.bf16.mxu0 %v766
          %1274 = vmatmul.mubr.bf16.gmra.mrb[0].mxu0 %v765
          %v1275 = vpop.f32.mrb[0].mxu0
          %v1276 = vadd.f32 %v1236, %v1275
          %v1277 = vpop.f32.mrb[0].mxu0
          %v1278 = vpop.f32.mrb[0].mxu0
          %v1279 = vpop.f32.mrb[0].mxu0
          %1280 = vdwg.mxu0
          %1281 = vmatprep.subr.bf16.mxu0 0
          %1282 = vmatpush1.bf16.msra.mxu0 %v1081
          %1283 = vmatprep.subr.bf16.mxu0 0
          %1284 = vmatpush1.bf16.msra.mxu0 %v1082
          %1285 = vmatprep.subr.bf16.mxu0 0
          %1286 = vmatpush1.bf16.msra.mxu0 %v1083
          %1287 = vmatprep.subr.bf16.mxu0 0
          %1288 = vmatpush1.bf16.msra.mxu0 %v1084
          %1289 = vmatprep.subr.bf16.mxu0 0
          %1290 = vmatpush1.bf16.msra.mxu0 %v1085
          %1291 = vmatprep.subr.bf16.mxu0 0
          %1292 = vmatpush1.bf16.msra.mxu0 %v1086
          %1293 = vmatprep.subr.bf16.mxu0 0
          %1294 = vmatpush1.bf16.msra.mxu0 %v1087
          %1295 = vmatprep.subr.bf16.mxu0 0
          %1296 = vmatpush1.bf16.msra.mxu0 %v1088
          %1297 = vmatprep.subr.bf16.mxu0 0
          %1298 = vmatpush1.bf16.msra.mxu0 %v1089
          %1299 = vmatprep.subr.bf16.mxu0 0
          %1300 = vmatpush1.bf16.msra.mxu0 %v1090
          %1301 = vmatprep.subr.bf16.mxu0 0
          %1302 = vmatpush1.bf16.msra.mxu0 %v1091
          %1303 = vmatprep.subr.bf16.mxu0 0
          %1304 = vmatpush1.bf16.msra.mxu0 %v1092
          %1305 = vmatprep.subr.bf16.mxu0 0
          %1306 = vmatpush1.bf16.msra.mxu0 %v1093
          %1307 = vmatprep.subr.bf16.mxu0 0
          %1308 = vmatpush1.bf16.msra.mxu0 %v1094
          %1309 = vmatprep.subr.bf16.mxu0 0
          %1310 = vmatpush1.bf16.msra.mxu0 %v1095
          %1311 = vmatprep.subr.bf16.mxu0 0
          %1312 = vmatpush1.bf16.msra.mxu0 %v1096
          %1313 = vmatprep.mubr.bf16.mxu0 %v768
          %1314 = vmatmul.mubr.bf16.gmra.mrb[0].mxu0 %v767
          %v1315 = vpop.f32.mrb[0].mxu0
          %v1316 = vadd.f32 %v1276, %v1315
          %v1317 = vpop.f32.mrb[0].mxu0
          %v1318 = vpop.f32.mrb[0].mxu0
          %v1319 = vpop.f32.mrb[0].mxu0
          %1320 = vdwg.mxu0
          %v1321 = vmax.f32 %v1316, 0.0
          %v1322 = vpack.c.bf16 %v1321, %v1321
          %v1323 = vld [vmem:[%s5] sm:$0xf]
          %v1324 = vld [vmem:[%s5 + $0x4] sm:$0xf]
          %v1325 = vld [vmem:[%s5 + $0x8] sm:$0xf]
          %v1326 = vld [vmem:[%s5 + $0xc] sm:$0xf]
          %v1327 = vld [vmem:[%s5 + $0x10] sm:$0xf]
          %v1328 = vld [vmem:[%s5 + $0x14] sm:$0xf]
          %v1329 = vld [vmem:[%s5 + $0x18] sm:$0xf]
          %v1330 = vld [vmem:[%s5 + $0x1c] sm:$0xf]
          %v1331 = vld [vmem:[%s5 + $0x20] sm:$0xf]
          %v1332 = vld [vmem:[%s5 + $0x24] sm:$0xf]
          %v1333 = vld [vmem:[%s5 + $0x28] sm:$0xf]
          %v1334 = vld [vmem:[%s5 + $0x2c] sm:$0xf]
          %v1335 = vld [vmem:[%s5 + $0x30] sm:$0xf]
          %v1336 = vld [vmem:[%s5 + $0x34] sm:$0xf]
          %v1337 = vld [vmem:[%s5 + $0x38] sm:$0xf]
          %v1338 = vld [vmem:[%s5 + $0x3c] sm:$0xf]
          %v1339 = vld [vmem:[%s6] sm:$0x1]
          %v1341 = vlaneseq
          %v1342 = vshrl.u32 %v1341, 7
          %v1343 = vsub.s32 0, %v1342
          %v1344 = vrot.slane %v1339, %v1343
          %v1362 = vunpack.c.l.b16 %v1323
          %v1363 = vunpack.c.l.b16 %v1324
          %v1364 = vunpack.c.l.b16 %v1325
          %v1365 = vunpack.c.l.b16 %v1326
          %v1366 = vunpack.c.l.b16 %v1327
          %v1367 = vunpack.c.l.b16 %v1328
          %v1368 = vunpack.c.l.b16 %v1329
          %v1369 = vunpack.c.l.b16 %v1330
          %v1370 = vunpack.c.l.b16 %v1331
          %v1371 = vunpack.c.l.b16 %v1332
          %v1372 = vunpack.c.l.b16 %v1333
          %v1373 = vunpack.c.l.b16 %v1334
          %v1374 = vunpack.c.l.b16 %v1335
          %v1375 = vunpack.c.l.b16 %v1336
          %v1376 = vunpack.c.l.b16 %v1337
          %v1377 = vunpack.c.l.b16 %v1338
          %v1378 = vpack.c.b16 %v1363, %v1362
          %v1379 = vpack.c.b16 %v1365, %v1364
          %v1380 = vpack.c.b16 %v1367, %v1366
          %v1381 = vpack.c.b16 %v1369, %v1368
          %v1382 = vpack.c.b16 %v1371, %v1370
          %v1383 = vpack.c.b16 %v1373, %v1372
          %v1384 = vpack.c.b16 %v1375, %v1374
          %v1385 = vpack.c.b16 %v1377, %v1376
          %1394 = vmatprep.subr.bf16.mxu0 0
          %1395 = vmatpush1.bf16.msra.mxu0 %v1378
          %1396 = vmatprep.subr.bf16.mxu0 0
          %1397 = vmatpush1.bf16.msra.mxu0 %v1379
          %1398 = vmatprep.subr.bf16.mxu0 0
          %1399 = vmatpush1.bf16.msra.mxu0 %v1380
          %1400 = vmatprep.subr.bf16.mxu0 0
          %1401 = vmatpush1.bf16.msra.mxu0 %v1381
          %1402 = vmatprep.subr.bf16.mxu0 0
          %1403 = vmatpush1.bf16.msra.mxu0 %v1382
          %1404 = vmatprep.subr.bf16.mxu0 0
          %1405 = vmatpush1.bf16.msra.mxu0 %v1383
          %1406 = vmatprep.subr.bf16.mxu0 0
          %1407 = vmatpush1.bf16.msra.mxu0 %v1384
          %1408 = vmatprep.subr.bf16.mxu0 0
          %1409 = vmatpush1.bf16.msra.mxu0 %v1385
          %1410 = vmatprep.subr.bf16.mxu0 0
          %1411 = vmatpush1.bf16.msra.mxu0 0
          %1412 = vmatprep.subr.bf16.mxu0 0
          %1413 = vmatpush1.bf16.msra.mxu0 0
          %1414 = vmatprep.subr.bf16.mxu0 0
          %1415 = vmatpush1.bf16.msra.mxu0 0
          %1416 = vmatprep.subr.bf16.mxu0 0
          %1417 = vmatpush1.bf16.msra.mxu0 0
          %1418 = vmatprep.subr.bf16.mxu0 0
          %1419 = vmatpush1.bf16.msra.mxu0 0
          %1420 = vmatprep.subr.bf16.mxu0 0
          %1421 = vmatpush1.bf16.msra.mxu0 0
          %1422 = vmatprep.subr.bf16.mxu0 0
          %1423 = vmatpush1.bf16.msra.mxu0 0
          %1424 = vmatprep.subr.bf16.mxu0 0
          %1425 = vmatpush1.bf16.msra.mxu0 0
          %1426 = vmatprep.mubr.bf16.mxu0 0
          %1427 = vmatmul.mubr.bf16.gmra.mrb[0].mxu0 %v1322
          %v1428 = vpop.f32.mrb[0].mxu0
          %v1429 = vadd.f32 %v1344, %v1428
          %v1430 = vpop.f32.mrb[0].mxu0
          %v1431 = vpop.f32.mrb[0].mxu0
          %v1432 = vpop.f32.mrb[0].mxu0
          %1433 = vdwg.mxu0
          %v1434 = vmul.f32 %v1429, %v1429
          %1435 = vadd.xlane.f32.xlu0 %v1434
          %v1436 = vpop.xlane.xlu0 %1435
          %v1437 = vmax.f32 %v1436, 1e-24
          %v1438 = vrsqrt.pop %v1437
          %v1439 = vmul.f32 %v1429, %v1438
          %v1440 = vld [vmem:[%s595] sm:$0xff]
          %v1441 = vld [vmem:[%s595 + $0x8] sm:$0xff]
          %v1442 = vld [vmem:[%s595 + $0x10] sm:$0xff]
          %v1443 = vld [vmem:[%s595 + $0x18] sm:$0xff]
          %v1444 = vld [vmem:[%s7] sm:$0xf]
          %v1445 = vld [vmem:[%s7 + $0x4] sm:$0xf]
          %v1446 = vld [vmem:[%s7 + $0x8] sm:$0xf]
          %v1447 = vld [vmem:[%s7 + $0xc] sm:$0xf]
          %v1448 = vld [vmem:[%s7 + $0x10] sm:$0xf]
          %v1449 = vld [vmem:[%s7 + $0x14] sm:$0xf]
          %v1450 = vld [vmem:[%s7 + $0x18] sm:$0xf]
          %v1451 = vld [vmem:[%s7 + $0x1c] sm:$0xf]
          %v1452 = vld [vmem:[%s7 + $0x20] sm:$0xf]
          %v1453 = vld [vmem:[%s7 + $0x24] sm:$0xf]
          %v1454 = vld [vmem:[%s7 + $0x28] sm:$0xf]
          %v1455 = vld [vmem:[%s7 + $0x2c] sm:$0xf]
          %v1456 = vld [vmem:[%s7 + $0x30] sm:$0xf]
          %v1457 = vld [vmem:[%s7 + $0x34] sm:$0xf]
          %v1458 = vld [vmem:[%s7 + $0x38] sm:$0xf]
          %v1459 = vld [vmem:[%s7 + $0x3c] sm:$0xf]
          %v1460 = vld [vmem:[%s7 + $0x40] sm:$0xf]
          %v1461 = vld [vmem:[%s7 + $0x44] sm:$0xf]
          %v1462 = vld [vmem:[%s7 + $0x48] sm:$0xf]
          %v1463 = vld [vmem:[%s7 + $0x4c] sm:$0xf]
          %v1464 = vld [vmem:[%s7 + $0x50] sm:$0xf]
          %v1465 = vld [vmem:[%s7 + $0x54] sm:$0xf]
          %v1466 = vld [vmem:[%s7 + $0x58] sm:$0xf]
          %v1467 = vld [vmem:[%s7 + $0x5c] sm:$0xf]
          %v1468 = vld [vmem:[%s7 + $0x60] sm:$0xf]
          %v1469 = vld [vmem:[%s7 + $0x64] sm:$0xf]
          %v1470 = vld [vmem:[%s7 + $0x68] sm:$0xf]
          %v1471 = vld [vmem:[%s7 + $0x6c] sm:$0xf]
          %v1472 = vld [vmem:[%s7 + $0x70] sm:$0xf]
          %v1473 = vld [vmem:[%s7 + $0x74] sm:$0xf]
          %v1474 = vld [vmem:[%s7 + $0x78] sm:$0xf]
          %v1475 = vld [vmem:[%s7 + $0x7c] sm:$0xf]
          %v1476 = vld [vmem:[%s7 + $0x80] sm:$0xf]
          %v1477 = vld [vmem:[%s7 + $0x84] sm:$0xf]
          %v1478 = vld [vmem:[%s7 + $0x88] sm:$0xf]
          %v1479 = vld [vmem:[%s7 + $0x8c] sm:$0xf]
          %v1480 = vld [vmem:[%s7 + $0x90] sm:$0xf]
          %v1481 = vld [vmem:[%s7 + $0x94] sm:$0xf]
          %v1482 = vld [vmem:[%s7 + $0x98] sm:$0xf]
          %v1483 = vld [vmem:[%s7 + $0x9c] sm:$0xf]
          %v1484 = vld [vmem:[%s7 + $0xa0] sm:$0xf]
          %v1485 = vld [vmem:[%s7 + $0xa4] sm:$0xf]
          %v1486 = vld [vmem:[%s7 + $0xa8] sm:$0xf]
          %v1487 = vld [vmem:[%s7 + $0xac] sm:$0xf]
          %v1488 = vld [vmem:[%s7 + $0xb0] sm:$0xf]
          %v1489 = vld [vmem:[%s7 + $0xb4] sm:$0xf]
          %v1490 = vld [vmem:[%s7 + $0xb8] sm:$0xf]
          %v1491 = vld [vmem:[%s7 + $0xbc] sm:$0xf]
          %v1492 = vld [vmem:[%s7 + $0xc0] sm:$0xf]
          %v1493 = vld [vmem:[%s7 + $0xc4] sm:$0xf]
          %v1494 = vld [vmem:[%s7 + $0xc8] sm:$0xf]
          %v1495 = vld [vmem:[%s7 + $0xcc] sm:$0xf]
          %v1496 = vld [vmem:[%s7 + $0xd0] sm:$0xf]
          %v1497 = vld [vmem:[%s7 + $0xd4] sm:$0xf]
          %v1498 = vld [vmem:[%s7 + $0xd8] sm:$0xf]
          %v1499 = vld [vmem:[%s7 + $0xdc] sm:$0xf]
          %v1500 = vld [vmem:[%s7 + $0xe0] sm:$0xf]
          %v1501 = vld [vmem:[%s7 + $0xe4] sm:$0xf]
          %v1502 = vld [vmem:[%s7 + $0xe8] sm:$0xf]
          %v1503 = vld [vmem:[%s7 + $0xec] sm:$0xf]
          %v1504 = vld [vmem:[%s7 + $0xf0] sm:$0xf]
          %v1505 = vld [vmem:[%s7 + $0xf4] sm:$0xf]
          %v1506 = vld [vmem:[%s7 + $0xf8] sm:$0xf]
          %v1507 = vld [vmem:[%s7 + $0xfc] sm:$0xf]
          %v1508 = vld [vmem:[%s7 + $0x100] sm:$0xf]
          %v1509 = vld [vmem:[%s7 + $0x104] sm:$0xf]
          %v1510 = vld [vmem:[%s7 + $0x108] sm:$0xf]
          %v1511 = vld [vmem:[%s7 + $0x10c] sm:$0xf]
          %v1512 = vld [vmem:[%s7 + $0x110] sm:$0xf]
          %v1513 = vld [vmem:[%s7 + $0x114] sm:$0xf]
          %v1514 = vld [vmem:[%s7 + $0x118] sm:$0xf]
          %v1515 = vld [vmem:[%s7 + $0x11c] sm:$0xf]
          %v1516 = vld [vmem:[%s7 + $0x120] sm:$0xf]
          %v1517 = vld [vmem:[%s7 + $0x124] sm:$0xf]
          %v1518 = vld [vmem:[%s7 + $0x128] sm:$0xf]
          %v1519 = vld [vmem:[%s7 + $0x12c] sm:$0xf]
          %v1520 = vld [vmem:[%s7 + $0x130] sm:$0xf]
          %v1521 = vld [vmem:[%s7 + $0x134] sm:$0xf]
          %v1522 = vld [vmem:[%s7 + $0x138] sm:$0xf]
          %v1523 = vld [vmem:[%s7 + $0x13c] sm:$0xf]
          %v1524 = vld [vmem:[%s7 + $0x140] sm:$0xf]
          %v1525 = vld [vmem:[%s7 + $0x144] sm:$0xf]
          %v1526 = vld [vmem:[%s7 + $0x148] sm:$0xf]
          %v1527 = vld [vmem:[%s7 + $0x14c] sm:$0xf]
          %v1528 = vld [vmem:[%s7 + $0x150] sm:$0xf]
          %v1529 = vld [vmem:[%s7 + $0x154] sm:$0xf]
          %v1530 = vld [vmem:[%s7 + $0x158] sm:$0xf]
          %v1531 = vld [vmem:[%s7 + $0x15c] sm:$0xf]
          %v1532 = vld [vmem:[%s7 + $0x160] sm:$0xf]
          %v1533 = vld [vmem:[%s7 + $0x164] sm:$0xf]
          %v1534 = vld [vmem:[%s7 + $0x168] sm:$0xf]
          %v1535 = vld [vmem:[%s7 + $0x16c] sm:$0xf]
          %v1536 = vld [vmem:[%s7 + $0x170] sm:$0xf]
          %v1537 = vld [vmem:[%s7 + $0x174] sm:$0xf]
          %v1538 = vld [vmem:[%s7 + $0x178] sm:$0xf]
          %v1539 = vld [vmem:[%s7 + $0x17c] sm:$0xf]
          %v1540 = vld [vmem:[%s7 + $0x180] sm:$0xf]
          %v1541 = vld [vmem:[%s7 + $0x184] sm:$0xf]
          %v1542 = vld [vmem:[%s7 + $0x188] sm:$0xf]
          %v1543 = vld [vmem:[%s7 + $0x18c] sm:$0xf]
          %v1544 = vld [vmem:[%s7 + $0x190] sm:$0xf]
          %v1545 = vld [vmem:[%s7 + $0x194] sm:$0xf]
          %v1546 = vld [vmem:[%s7 + $0x198] sm:$0xf]
          %v1547 = vld [vmem:[%s7 + $0x19c] sm:$0xf]
          %v1548 = vld [vmem:[%s7 + $0x1a0] sm:$0xf]
          %v1549 = vld [vmem:[%s7 + $0x1a4] sm:$0xf]
          %v1550 = vld [vmem:[%s7 + $0x1a8] sm:$0xf]
          %v1551 = vld [vmem:[%s7 + $0x1ac] sm:$0xf]
          %v1552 = vld [vmem:[%s7 + $0x1b0] sm:$0xf]
          %v1553 = vld [vmem:[%s7 + $0x1b4] sm:$0xf]
          %v1554 = vld [vmem:[%s7 + $0x1b8] sm:$0xf]
          %v1555 = vld [vmem:[%s7 + $0x1bc] sm:$0xf]
          %v1556 = vld [vmem:[%s7 + $0x1c0] sm:$0xf]
          %v1557 = vld [vmem:[%s7 + $0x1c4] sm:$0xf]
          %v1558 = vld [vmem:[%s7 + $0x1c8] sm:$0xf]
          %v1559 = vld [vmem:[%s7 + $0x1cc] sm:$0xf]
          %v1560 = vld [vmem:[%s7 + $0x1d0] sm:$0xf]
          %v1561 = vld [vmem:[%s7 + $0x1d4] sm:$0xf]
          %v1562 = vld [vmem:[%s7 + $0x1d8] sm:$0xf]
          %v1563 = vld [vmem:[%s7 + $0x1dc] sm:$0xf]
          %v1564 = vld [vmem:[%s7 + $0x1e0] sm:$0xf]
          %v1565 = vld [vmem:[%s7 + $0x1e4] sm:$0xf]
          %v1566 = vld [vmem:[%s7 + $0x1e8] sm:$0xf]
          %v1567 = vld [vmem:[%s7 + $0x1ec] sm:$0xf]
          %v1568 = vld [vmem:[%s7 + $0x1f0] sm:$0xf]
          %v1569 = vld [vmem:[%s7 + $0x1f4] sm:$0xf]
          %v1570 = vld [vmem:[%s7 + $0x1f8] sm:$0xf]
          %v1571 = vld [vmem:[%s7 + $0x1fc] sm:$0xf]
          %v1572 = vld [vmem:[%s8] sm:$0x1]
          %v1574 = vlaneseq
          %v1575 = vshrl.u32 %v1574, 7
          %v1576 = vsub.s32 0, %v1575
          %v1577 = vrot.slane %v1572, %v1576
          %v1583 = vunpack.c.l.b16 %v1440
          %v1584 = vunpack.c.h.b16 %v1440
          %v1585 = vunpack.c.l.b16 %v1441
          %v1586 = vunpack.c.h.b16 %v1441
          %v1587 = vunpack.c.l.b16 %v1442
          %v1588 = vunpack.c.h.b16 %v1442
          %v1589 = vunpack.c.l.b16 %v1443
          %v1590 = vunpack.c.h.b16 %v1443
          %v1591 = vpack.c.b16 %v1583, %v1583
          %v1592 = vpack.c.b16 %v1584, %v1584
          %v1593 = vpack.c.b16 %v1585, %v1585
          %v1594 = vpack.c.b16 %v1586, %v1586
          %v1595 = vpack.c.b16 %v1587, %v1587
          %v1596 = vpack.c.b16 %v1588, %v1588
          %v1597 = vpack.c.b16 %v1589, %v1589
          %v1598 = vpack.c.b16 %v1590, %v1590
          %v1735 = vunpack.c.l.b16 %v1444
          %v1736 = vunpack.c.l.b16 %v1445
          %v1737 = vunpack.c.l.b16 %v1446
          %v1738 = vunpack.c.l.b16 %v1447
          %v1739 = vunpack.c.l.b16 %v1448
          %v1740 = vunpack.c.l.b16 %v1449
          %v1741 = vunpack.c.l.b16 %v1450
          %v1742 = vunpack.c.l.b16 %v1451
          %v1743 = vunpack.c.l.b16 %v1452
          %v1744 = vunpack.c.l.b16 %v1453
          %v1745 = vunpack.c.l.b16 %v1454
          %v1746 = vunpack.c.l.b16 %v1455
          %v1747 = vunpack.c.l.b16 %v1456
          %v1748 = vunpack.c.l.b16 %v1457
          %v1749 = vunpack.c.l.b16 %v1458
          %v1750 = vunpack.c.l.b16 %v1459
          %v1751 = vunpack.c.l.b16 %v1460
          %v1752 = vunpack.c.l.b16 %v1461
          %v1753 = vunpack.c.l.b16 %v1462
          %v1754 = vunpack.c.l.b16 %v1463
          %v1755 = vunpack.c.l.b16 %v1464
          %v1756 = vunpack.c.l.b16 %v1465
          %v1757 = vunpack.c.l.b16 %v1466
          %v1758 = vunpack.c.l.b16 %v1467
          %v1759 = vunpack.c.l.b16 %v1468
          %v1760 = vunpack.c.l.b16 %v1469
          %v1761 = vunpack.c.l.b16 %v1470
          %v1762 = vunpack.c.l.b16 %v1471
          %v1763 = vunpack.c.l.b16 %v1472
          %v1764 = vunpack.c.l.b16 %v1473
          %v1765 = vunpack.c.l.b16 %v1474
          %v1766 = vunpack.c.l.b16 %v1475
          %v1767 = vunpack.c.l.b16 %v1476
          %v1768 = vunpack.c.l.b16 %v1477
          %v1769 = vunpack.c.l.b16 %v1478
          %v1770 = vunpack.c.l.b16 %v1479
          %v1771 = vunpack.c.l.b16 %v1480
          %v1772 = vunpack.c.l.b16 %v1481
          %v1773 = vunpack.c.l.b16 %v1482
          %v1774 = vunpack.c.l.b16 %v1483
          %v1775 = vunpack.c.l.b16 %v1484
          %v1776 = vunpack.c.l.b16 %v1485
          %v1777 = vunpack.c.l.b16 %v1486
          %v1778 = vunpack.c.l.b16 %v1487
          %v1779 = vunpack.c.l.b16 %v1488
          %v1780 = vunpack.c.l.b16 %v1489
          %v1781 = vunpack.c.l.b16 %v1490
          %v1782 = vunpack.c.l.b16 %v1491
          %v1783 = vunpack.c.l.b16 %v1492
          %v1784 = vunpack.c.l.b16 %v1493
          %v1785 = vunpack.c.l.b16 %v1494
          %v1786 = vunpack.c.l.b16 %v1495
          %v1787 = vunpack.c.l.b16 %v1496
          %v1788 = vunpack.c.l.b16 %v1497
          %v1789 = vunpack.c.l.b16 %v1498
          %v1790 = vunpack.c.l.b16 %v1499
          %v1791 = vunpack.c.l.b16 %v1500
          %v1792 = vunpack.c.l.b16 %v1501
          %v1793 = vunpack.c.l.b16 %v1502
          %v1794 = vunpack.c.l.b16 %v1503
          %v1795 = vunpack.c.l.b16 %v1504
          %v1796 = vunpack.c.l.b16 %v1505
          %v1797 = vunpack.c.l.b16 %v1506
          %v1798 = vunpack.c.l.b16 %v1507
          %v1799 = vunpack.c.l.b16 %v1508
          %v1800 = vunpack.c.l.b16 %v1509
          %v1801 = vunpack.c.l.b16 %v1510
          %v1802 = vunpack.c.l.b16 %v1511
          %v1803 = vunpack.c.l.b16 %v1512
          %v1804 = vunpack.c.l.b16 %v1513
          %v1805 = vunpack.c.l.b16 %v1514
          %v1806 = vunpack.c.l.b16 %v1515
          %v1807 = vunpack.c.l.b16 %v1516
          %v1808 = vunpack.c.l.b16 %v1517
          %v1809 = vunpack.c.l.b16 %v1518
          %v1810 = vunpack.c.l.b16 %v1519
          %v1811 = vunpack.c.l.b16 %v1520
          %v1812 = vunpack.c.l.b16 %v1521
          %v1813 = vunpack.c.l.b16 %v1522
          %v1814 = vunpack.c.l.b16 %v1523
          %v1815 = vunpack.c.l.b16 %v1524
          %v1816 = vunpack.c.l.b16 %v1525
          %v1817 = vunpack.c.l.b16 %v1526
          %v1818 = vunpack.c.l.b16 %v1527
          %v1819 = vunpack.c.l.b16 %v1528
          %v1820 = vunpack.c.l.b16 %v1529
          %v1821 = vunpack.c.l.b16 %v1530
          %v1822 = vunpack.c.l.b16 %v1531
          %v1823 = vunpack.c.l.b16 %v1532
          %v1824 = vunpack.c.l.b16 %v1533
          %v1825 = vunpack.c.l.b16 %v1534
          %v1826 = vunpack.c.l.b16 %v1535
          %v1827 = vunpack.c.l.b16 %v1536
          %v1828 = vunpack.c.l.b16 %v1537
          %v1829 = vunpack.c.l.b16 %v1538
          %v1830 = vunpack.c.l.b16 %v1539
          %v1831 = vunpack.c.l.b16 %v1540
          %v1832 = vunpack.c.l.b16 %v1541
          %v1833 = vunpack.c.l.b16 %v1542
          %v1834 = vunpack.c.l.b16 %v1543
          %v1835 = vunpack.c.l.b16 %v1544
          %v1836 = vunpack.c.l.b16 %v1545
          %v1837 = vunpack.c.l.b16 %v1546
          %v1838 = vunpack.c.l.b16 %v1547
          %v1839 = vunpack.c.l.b16 %v1548
          %v1840 = vunpack.c.l.b16 %v1549
          %v1841 = vunpack.c.l.b16 %v1550
          %v1842 = vunpack.c.l.b16 %v1551
          %v1843 = vunpack.c.l.b16 %v1552
          %v1844 = vunpack.c.l.b16 %v1553
          %v1845 = vunpack.c.l.b16 %v1554
          %v1846 = vunpack.c.l.b16 %v1555
          %v1847 = vunpack.c.l.b16 %v1556
          %v1848 = vunpack.c.l.b16 %v1557
          %v1849 = vunpack.c.l.b16 %v1558
          %v1850 = vunpack.c.l.b16 %v1559
          %v1851 = vunpack.c.l.b16 %v1560
          %v1852 = vunpack.c.l.b16 %v1561
          %v1853 = vunpack.c.l.b16 %v1562
          %v1854 = vunpack.c.l.b16 %v1563
          %v1855 = vunpack.c.l.b16 %v1564
          %v1856 = vunpack.c.l.b16 %v1565
          %v1857 = vunpack.c.l.b16 %v1566
          %v1858 = vunpack.c.l.b16 %v1567
          %v1859 = vunpack.c.l.b16 %v1568
          %v1860 = vunpack.c.l.b16 %v1569
          %v1861 = vunpack.c.l.b16 %v1570
          %v1862 = vunpack.c.l.b16 %v1571
          %v1863 = vpack.c.b16 %v1736, %v1735
          %v1864 = vpack.c.b16 %v1738, %v1737
          %v1865 = vpack.c.b16 %v1740, %v1739
          %v1866 = vpack.c.b16 %v1742, %v1741
          %v1867 = vpack.c.b16 %v1744, %v1743
          %v1868 = vpack.c.b16 %v1746, %v1745
          %v1869 = vpack.c.b16 %v1748, %v1747
          %v1870 = vpack.c.b16 %v1750, %v1749
          %v1871 = vpack.c.b16 %v1752, %v1751
          %v1872 = vpack.c.b16 %v1754, %v1753
          %v1873 = vpack.c.b16 %v1756, %v1755
          %v1874 = vpack.c.b16 %v1758, %v1757
          %v1875 = vpack.c.b16 %v1760, %v1759
          %v1876 = vpack.c.b16 %v1762, %v1761
          %v1877 = vpack.c.b16 %v1764, %v1763
          %v1878 = vpack.c.b16 %v1766, %v1765
          %v1879 = vpack.c.b16 %v1768, %v1767
          %v1880 = vpack.c.b16 %v1770, %v1769
          %v1881 = vpack.c.b16 %v1772, %v1771
          %v1882 = vpack.c.b16 %v1774, %v1773
          %v1883 = vpack.c.b16 %v1776, %v1775
          %v1884 = vpack.c.b16 %v1778, %v1777
          %v1885 = vpack.c.b16 %v1780, %v1779
          %v1886 = vpack.c.b16 %v1782, %v1781
          %v1887 = vpack.c.b16 %v1784, %v1783
          %v1888 = vpack.c.b16 %v1786, %v1785
          %v1889 = vpack.c.b16 %v1788, %v1787
          %v1890 = vpack.c.b16 %v1790, %v1789
          %v1891 = vpack.c.b16 %v1792, %v1791
          %v1892 = vpack.c.b16 %v1794, %v1793
          %v1893 = vpack.c.b16 %v1796, %v1795
          %v1894 = vpack.c.b16 %v1798, %v1797
          %v1895 = vpack.c.b16 %v1800, %v1799
          %v1896 = vpack.c.b16 %v1802, %v1801
          %v1897 = vpack.c.b16 %v1804, %v1803
          %v1898 = vpack.c.b16 %v1806, %v1805
          %v1899 = vpack.c.b16 %v1808, %v1807
          %v1900 = vpack.c.b16 %v1810, %v1809
          %v1901 = vpack.c.b16 %v1812, %v1811
          %v1902 = vpack.c.b16 %v1814, %v1813
          %v1903 = vpack.c.b16 %v1816, %v1815
          %v1904 = vpack.c.b16 %v1818, %v1817
          %v1905 = vpack.c.b16 %v1820, %v1819
          %v1906 = vpack.c.b16 %v1822, %v1821
          %v1907 = vpack.c.b16 %v1824, %v1823
          %v1908 = vpack.c.b16 %v1826, %v1825
          %v1909 = vpack.c.b16 %v1828, %v1827
          %v1910 = vpack.c.b16 %v1830, %v1829
          %v1911 = vpack.c.b16 %v1832, %v1831
          %v1912 = vpack.c.b16 %v1834, %v1833
          %v1913 = vpack.c.b16 %v1836, %v1835
          %v1914 = vpack.c.b16 %v1838, %v1837
          %v1915 = vpack.c.b16 %v1840, %v1839
          %v1916 = vpack.c.b16 %v1842, %v1841
          %v1917 = vpack.c.b16 %v1844, %v1843
          %v1918 = vpack.c.b16 %v1846, %v1845
          %v1919 = vpack.c.b16 %v1848, %v1847
          %v1920 = vpack.c.b16 %v1850, %v1849
          %v1921 = vpack.c.b16 %v1852, %v1851
          %v1922 = vpack.c.b16 %v1854, %v1853
          %v1923 = vpack.c.b16 %v1856, %v1855
          %v1924 = vpack.c.b16 %v1858, %v1857
          %v1925 = vpack.c.b16 %v1860, %v1859
          %v1926 = vpack.c.b16 %v1862, %v1861
          %1991 = vmatprep.subr.bf16.mxu0 0
          %1992 = vmatpush1.bf16.msra.mxu0 %v1863
          %1993 = vmatprep.subr.bf16.mxu0 0
          %1994 = vmatpush1.bf16.msra.mxu0 %v1864
          %1995 = vmatprep.subr.bf16.mxu0 0
          %1996 = vmatpush1.bf16.msra.mxu0 %v1865
          %1997 = vmatprep.subr.bf16.mxu0 0
          %1998 = vmatpush1.bf16.msra.mxu0 %v1866
          %1999 = vmatprep.subr.bf16.mxu0 0
          %2000 = vmatpush1.bf16.msra.mxu0 %v1867
          %2001 = vmatprep.subr.bf16.mxu0 0
          %2002 = vmatpush1.bf16.msra.mxu0 %v1868
          %2003 = vmatprep.subr.bf16.mxu0 0
          %2004 = vmatpush1.bf16.msra.mxu0 %v1869
          %2005 = vmatprep.subr.bf16.mxu0 0
          %2006 = vmatpush1.bf16.msra.mxu0 %v1870
          %2007 = vmatprep.subr.bf16.mxu0 0
          %2008 = vmatpush1.bf16.msra.mxu0 %v1871
          %2009 = vmatprep.subr.bf16.mxu0 0
          %2010 = vmatpush1.bf16.msra.mxu0 %v1872
          %2011 = vmatprep.subr.bf16.mxu0 0
          %2012 = vmatpush1.bf16.msra.mxu0 %v1873
          %2013 = vmatprep.subr.bf16.mxu0 0
          %2014 = vmatpush1.bf16.msra.mxu0 %v1874
          %2015 = vmatprep.subr.bf16.mxu0 0
          %2016 = vmatpush1.bf16.msra.mxu0 %v1875
          %2017 = vmatprep.subr.bf16.mxu0 0
          %2018 = vmatpush1.bf16.msra.mxu0 %v1876
          %2019 = vmatprep.subr.bf16.mxu0 0
          %2020 = vmatpush1.bf16.msra.mxu0 %v1877
          %2021 = vmatprep.subr.bf16.mxu0 0
          %2022 = vmatpush1.bf16.msra.mxu0 %v1878
          %2023 = vmatprep.mubr.bf16.mxu0 %v1592
          %2024 = vmatmul.mubr.bf16.gmra.mrb[0].mxu0 %v1591
          %v2025 = vpop.f32.mrb[0].mxu0
          %v2026 = vadd.f32 %v1577, %v2025
          %v2027 = vpop.f32.mrb[0].mxu0
          %v2028 = vpop.f32.mrb[0].mxu0
          %v2029 = vpop.f32.mrb[0].mxu0
          %2030 = vdwg.mxu0
          %2031 = vmatprep.subr.bf16.mxu0 0
          %2032 = vmatpush1.bf16.msra.mxu0 %v1879
          %2033 = vmatprep.subr.bf16.mxu0 0
          %2034 = vmatpush1.bf16.msra.mxu0 %v1880
          %2035 = vmatprep.subr.bf16.mxu0 0
          %2036 = vmatpush1.bf16.msra.mxu0 %v1881
          %2037 = vmatprep.subr.bf16.mxu0 0
          %2038 = vmatpush1.bf16.msra.mxu0 %v1882
          %2039 = vmatprep.subr.bf16.mxu0 0
          %2040 = vmatpush1.bf16.msra.mxu0 %v1883
          %2041 = vmatprep.subr.bf16.mxu0 0
          %2042 = vmatpush1.bf16.msra.mxu0 %v1884
          %2043 = vmatprep.subr.bf16.mxu0 0
          %2044 = vmatpush1.bf16.msra.mxu0 %v1885
          %2045 = vmatprep.subr.bf16.mxu0 0
          %2046 = vmatpush1.bf16.msra.mxu0 %v1886
          %2047 = vmatprep.subr.bf16.mxu0 0
          %2048 = vmatpush1.bf16.msra.mxu0 %v1887
          %2049 = vmatprep.subr.bf16.mxu0 0
          %2050 = vmatpush1.bf16.msra.mxu0 %v1888
          %2051 = vmatprep.subr.bf16.mxu0 0
          %2052 = vmatpush1.bf16.msra.mxu0 %v1889
          %2053 = vmatprep.subr.bf16.mxu0 0
          %2054 = vmatpush1.bf16.msra.mxu0 %v1890
          %2055 = vmatprep.subr.bf16.mxu0 0
          %2056 = vmatpush1.bf16.msra.mxu0 %v1891
          %2057 = vmatprep.subr.bf16.mxu0 0
          %2058 = vmatpush1.bf16.msra.mxu0 %v1892
          %2059 = vmatprep.subr.bf16.mxu0 0
          %2060 = vmatpush1.bf16.msra.mxu0 %v1893
          %2061 = vmatprep.subr.bf16.mxu0 0
          %2062 = vmatpush1.bf16.msra.mxu0 %v1894
          %2063 = vmatprep.mubr.bf16.mxu0 %v1594
          %2064 = vmatmul.mubr.bf16.gmra.mrb[0].mxu0 %v1593
          %v2065 = vpop.f32.mrb[0].mxu0
          %v2066 = vadd.f32 %v2026, %v2065
          %v2067 = vpop.f32.mrb[0].mxu0
          %v2068 = vpop.f32.mrb[0].mxu0
          %v2069 = vpop.f32.mrb[0].mxu0
          %2070 = vdwg.mxu0
          %2071 = vmatprep.subr.bf16.mxu0 0
          %2072 = vmatpush1.bf16.msra.mxu0 %v1895
          %2073 = vmatprep.subr.bf16.mxu0 0
          %2074 = vmatpush1.bf16.msra.mxu0 %v1896
          %2075 = vmatprep.subr.bf16.mxu0 0
          %2076 = vmatpush1.bf16.msra.mxu0 %v1897
          %2077 = vmatprep.subr.bf16.mxu0 0
          %2078 = vmatpush1.bf16.msra.mxu0 %v1898
          %2079 = vmatprep.subr.bf16.mxu0 0
          %2080 = vmatpush1.bf16.msra.mxu0 %v1899
          %2081 = vmatprep.subr.bf16.mxu0 0
          %2082 = vmatpush1.bf16.msra.mxu0 %v1900
          %2083 = vmatprep.subr.bf16.mxu0 0
          %2084 = vmatpush1.bf16.msra.mxu0 %v1901
          %2085 = vmatprep.subr.bf16.mxu0 0
          %2086 = vmatpush1.bf16.msra.mxu0 %v1902
          %2087 = vmatprep.subr.bf16.mxu0 0
          %2088 = vmatpush1.bf16.msra.mxu0 %v1903
          %2089 = vmatprep.subr.bf16.mxu0 0
          %2090 = vmatpush1.bf16.msra.mxu0 %v1904
          %2091 = vmatprep.subr.bf16.mxu0 0
          %2092 = vmatpush1.bf16.msra.mxu0 %v1905
          %2093 = vmatprep.subr.bf16.mxu0 0
          %2094 = vmatpush1.bf16.msra.mxu0 %v1906
          %2095 = vmatprep.subr.bf16.mxu0 0
          %2096 = vmatpush1.bf16.msra.mxu0 %v1907
          %2097 = vmatprep.subr.bf16.mxu0 0
          %2098 = vmatpush1.bf16.msra.mxu0 %v1908
          %2099 = vmatprep.subr.bf16.mxu0 0
          %2100 = vmatpush1.bf16.msra.mxu0 %v1909
          %2101 = vmatprep.subr.bf16.mxu0 0
          %2102 = vmatpush1.bf16.msra.mxu0 %v1910
          %2103 = vmatprep.mubr.bf16.mxu0 %v1596
          %2104 = vmatmul.mubr.bf16.gmra.mrb[0].mxu0 %v1595
          %v2105 = vpop.f32.mrb[0].mxu0
          %v2106 = vadd.f32 %v2066, %v2105
          %v2107 = vpop.f32.mrb[0].mxu0
          %v2108 = vpop.f32.mrb[0].mxu0
          %v2109 = vpop.f32.mrb[0].mxu0
          %2110 = vdwg.mxu0
          %2111 = vmatprep.subr.bf16.mxu0 0
          %2112 = vmatpush1.bf16.msra.mxu0 %v1911
          %2113 = vmatprep.subr.bf16.mxu0 0
          %2114 = vmatpush1.bf16.msra.mxu0 %v1912
          %2115 = vmatprep.subr.bf16.mxu0 0
          %2116 = vmatpush1.bf16.msra.mxu0 %v1913
          %2117 = vmatprep.subr.bf16.mxu0 0
          %2118 = vmatpush1.bf16.msra.mxu0 %v1914
          %2119 = vmatprep.subr.bf16.mxu0 0
          %2120 = vmatpush1.bf16.msra.mxu0 %v1915
          %2121 = vmatprep.subr.bf16.mxu0 0
          %2122 = vmatpush1.bf16.msra.mxu0 %v1916
          %2123 = vmatprep.subr.bf16.mxu0 0
          %2124 = vmatpush1.bf16.msra.mxu0 %v1917
          %2125 = vmatprep.subr.bf16.mxu0 0
          %2126 = vmatpush1.bf16.msra.mxu0 %v1918
          %2127 = vmatprep.subr.bf16.mxu0 0
          %2128 = vmatpush1.bf16.msra.mxu0 %v1919
          %2129 = vmatprep.subr.bf16.mxu0 0
          %2130 = vmatpush1.bf16.msra.mxu0 %v1920
          %2131 = vmatprep.subr.bf16.mxu0 0
          %2132 = vmatpush1.bf16.msra.mxu0 %v1921
          %2133 = vmatprep.subr.bf16.mxu0 0
          %2134 = vmatpush1.bf16.msra.mxu0 %v1922
          %2135 = vmatprep.subr.bf16.mxu0 0
          %2136 = vmatpush1.bf16.msra.mxu0 %v1923
          %2137 = vmatprep.subr.bf16.mxu0 0
          %2138 = vmatpush1.bf16.msra.mxu0 %v1924
          %2139 = vmatprep.subr.bf16.mxu0 0
          %2140 = vmatpush1.bf16.msra.mxu0 %v1925
          %2141 = vmatprep.subr.bf16.mxu0 0
          %2142 = vmatpush1.bf16.msra.mxu0 %v1926
          %2143 = vmatprep.mubr.bf16.mxu0 %v1598
          %2144 = vmatmul.mubr.bf16.gmra.mrb[0].mxu0 %v1597
          %v2145 = vpop.f32.mrb[0].mxu0
          %v2146 = vadd.f32 %v2106, %v2145
          %v2147 = vpop.f32.mrb[0].mxu0
          %v2148 = vpop.f32.mrb[0].mxu0
          %v2149 = vpop.f32.mrb[0].mxu0
          %2150 = vdwg.mxu0
          %v2151 = vmax.f32 %v2146, 0.0
          %v2152 = vpack.c.bf16 %v2151, %v2151
          %v2153 = vld [vmem:[%s9] sm:$0xf]
          %v2154 = vld [vmem:[%s9 + $0x4] sm:$0xf]
          %v2155 = vld [vmem:[%s9 + $0x8] sm:$0xf]
          %v2156 = vld [vmem:[%s9 + $0xc] sm:$0xf]
          %v2157 = vld [vmem:[%s9 + $0x10] sm:$0xf]
          %v2158 = vld [vmem:[%s9 + $0x14] sm:$0xf]
          %v2159 = vld [vmem:[%s9 + $0x18] sm:$0xf]
          %v2160 = vld [vmem:[%s9 + $0x1c] sm:$0xf]
          %v2161 = vld [vmem:[%s9 + $0x20] sm:$0xf]
          %v2162 = vld [vmem:[%s9 + $0x24] sm:$0xf]
          %v2163 = vld [vmem:[%s9 + $0x28] sm:$0xf]
          %v2164 = vld [vmem:[%s9 + $0x2c] sm:$0xf]
          %v2165 = vld [vmem:[%s9 + $0x30] sm:$0xf]
          %v2166 = vld [vmem:[%s9 + $0x34] sm:$0xf]
          %v2167 = vld [vmem:[%s9 + $0x38] sm:$0xf]
          %v2168 = vld [vmem:[%s9 + $0x3c] sm:$0xf]
          %v2169 = vld [vmem:[%s10] sm:$0x1]
          %v2171 = vlaneseq
          %v2172 = vshrl.u32 %v2171, 7
          %v2173 = vsub.s32 0, %v2172
          %v2174 = vrot.slane %v2169, %v2173
          %v2192 = vunpack.c.l.b16 %v2153
          %v2193 = vunpack.c.l.b16 %v2154
          %v2194 = vunpack.c.l.b16 %v2155
          %v2195 = vunpack.c.l.b16 %v2156
          %v2196 = vunpack.c.l.b16 %v2157
          %v2197 = vunpack.c.l.b16 %v2158
          %v2198 = vunpack.c.l.b16 %v2159
          %v2199 = vunpack.c.l.b16 %v2160
          %v2200 = vunpack.c.l.b16 %v2161
          %v2201 = vunpack.c.l.b16 %v2162
          %v2202 = vunpack.c.l.b16 %v2163
          %v2203 = vunpack.c.l.b16 %v2164
          %v2204 = vunpack.c.l.b16 %v2165
          %v2205 = vunpack.c.l.b16 %v2166
          %v2206 = vunpack.c.l.b16 %v2167
          %v2207 = vunpack.c.l.b16 %v2168
          %v2208 = vpack.c.b16 %v2193, %v2192
          %v2209 = vpack.c.b16 %v2195, %v2194
          %v2210 = vpack.c.b16 %v2197, %v2196
          %v2211 = vpack.c.b16 %v2199, %v2198
          %v2212 = vpack.c.b16 %v2201, %v2200
          %v2213 = vpack.c.b16 %v2203, %v2202
          %v2214 = vpack.c.b16 %v2205, %v2204
          %v2215 = vpack.c.b16 %v2207, %v2206
          %2224 = vmatprep.subr.bf16.mxu0 0
          %2225 = vmatpush1.bf16.msra.mxu0 %v2208
          %2226 = vmatprep.subr.bf16.mxu0 0
          %2227 = vmatpush1.bf16.msra.mxu0 %v2209
          %2228 = vmatprep.subr.bf16.mxu0 0
          %2229 = vmatpush1.bf16.msra.mxu0 %v2210
          %2230 = vmatprep.subr.bf16.mxu0 0
          %2231 = vmatpush1.bf16.msra.mxu0 %v2211
          %2232 = vmatprep.subr.bf16.mxu0 0
          %2233 = vmatpush1.bf16.msra.mxu0 %v2212
          %2234 = vmatprep.subr.bf16.mxu0 0
          %2235 = vmatpush1.bf16.msra.mxu0 %v2213
          %2236 = vmatprep.subr.bf16.mxu0 0
          %2237 = vmatpush1.bf16.msra.mxu0 %v2214
          %2238 = vmatprep.subr.bf16.mxu0 0
          %2239 = vmatpush1.bf16.msra.mxu0 %v2215
          %2240 = vmatprep.subr.bf16.mxu0 0
          %2241 = vmatpush1.bf16.msra.mxu0 0
          %2242 = vmatprep.subr.bf16.mxu0 0
          %2243 = vmatpush1.bf16.msra.mxu0 0
          %2244 = vmatprep.subr.bf16.mxu0 0
          %2245 = vmatpush1.bf16.msra.mxu0 0
          %2246 = vmatprep.subr.bf16.mxu0 0
          %2247 = vmatpush1.bf16.msra.mxu0 0
          %2248 = vmatprep.subr.bf16.mxu0 0
          %2249 = vmatpush1.bf16.msra.mxu0 0
          %2250 = vmatprep.subr.bf16.mxu0 0
          %2251 = vmatpush1.bf16.msra.mxu0 0
          %2252 = vmatprep.subr.bf16.mxu0 0
          %2253 = vmatpush1.bf16.msra.mxu0 0
          %2254 = vmatprep.subr.bf16.mxu0 0
          %2255 = vmatpush1.bf16.msra.mxu0 0
          %2256 = vmatprep.mubr.bf16.mxu0 0
          %2257 = vmatmul.mubr.bf16.gmra.mrb[0].mxu0 %v2152
          %v2258 = vpop.f32.mrb[0].mxu0
          %v2259 = vadd.f32 %v2174, %v2258
          %v2260 = vpop.f32.mrb[0].mxu0
          %v2261 = vpop.f32.mrb[0].mxu0
          %v2262 = vpop.f32.mrb[0].mxu0
          %2263 = vdwg.mxu0
          %v2264 = vmul.f32 %v2259, %v2259
          %2265 = vadd.xlane.f32.xlu0 %v2264
          %v2266 = vpop.xlane.xlu0 %2265
          %v2267 = vmax.f32 %v2266, 1e-24
          %v2268 = vrsqrt.pop %v2267
          %v2269 = vmul.f32 %v2259, %v2268
          %2270 = vst [vmem:[%s599] sm:$0xff] %v2269
          %v2271 = vpack.c.bf16 %v1439, %v1439
          %2272 = vst [vmem:[#allocation2] sm:$0xf] %v2271
          %v2273 = vmul.f32 %v1439, %v2269
          %2274 = vadd.xlane.f32.xlu0 %v2273
          %v2275 = vpop.xlane.xlu0 %2274
          %v2276 = vstv %s605
          %v2277 = vmul.f32 %v2275, %v2276
          %vm2278 = vcmask 7168
          %2279 = vst.msk [vmem:[#allocation3] sm:$0xff] %vm2278, %v2277
          %2280 = vst.msk [vmem:[#allocation4] sm:$0xff] %vm2278, %v2277
          %2281 = vst.msk [vmem:[#allocation5] sm:$0xff] %vm2278, 1.0
          %2282 = vst.msk [vmem:[#allocation6] sm:$0xff] %vm2278, 0.0
        $region113: #{moco_v2_forward.1} parent=104 // pred_fallthru
          _
        %v2283 = vld [vmem:[#allocation2] sm:$0xf]
        %v2284 = vld [vmem:[%s532] sm:$0xf]
        %v2285 = vld [vmem:[%s532 + $0x4] sm:$0xf]
        %v2286 = vld [vmem:[%s532 + $0x8] sm:$0xf]
        %v2287 = vld [vmem:[%s532 + $0xc] sm:$0xf]
        %v2288 = vld [vmem:[%s532 + $0x10] sm:$0xf]
        %v2289 = vld [vmem:[%s532 + $0x14] sm:$0xf]
        %v2290 = vld [vmem:[%s532 + $0x18] sm:$0xf]
        %v2291 = vld [vmem:[%s532 + $0x1c] sm:$0xf]
        %v2292 = vld [vmem:[%s532 + $0x20] sm:$0xf]
        %v2293 = vld [vmem:[%s532 + $0x24] sm:$0xf]
        %v2294 = vld [vmem:[%s532 + $0x28] sm:$0xf]
        %v2295 = vld [vmem:[%s532 + $0x2c] sm:$0xf]
        %v2296 = vld [vmem:[%s532 + $0x30] sm:$0xf]
        %v2297 = vld [vmem:[%s532 + $0x34] sm:$0xf]
        %v2298 = vld [vmem:[%s532 + $0x38] sm:$0xf]
        %v2299 = vld [vmem:[%s532 + $0x3c] sm:$0xf]
        %v2316 = vunpack.c.l.b16 %v2284
        %v2317 = vunpack.c.l.b16 %v2285
        %v2318 = vunpack.c.l.b16 %v2286
        %v2319 = vunpack.c.l.b16 %v2287
        %v2320 = vunpack.c.l.b16 %v2288
        %v2321 = vunpack.c.l.b16 %v2289
        %v2322 = vunpack.c.l.b16 %v2290
        %v2323 = vunpack.c.l.b16 %v2291
        %v2324 = vunpack.c.l.b16 %v2292
        %v2325 = vunpack.c.l.b16 %v2293
        %v2326 = vunpack.c.l.b16 %v2294
        %v2327 = vunpack.c.l.b16 %v2295
        %v2328 = vunpack.c.l.b16 %v2296
        %v2329 = vunpack.c.l.b16 %v2297
        %v2330 = vunpack.c.l.b16 %v2298
        %v2331 = vunpack.c.l.b16 %v2299
        %v2332 = vpack.c.b16 %v2317, %v2316
        %v2333 = vpack.c.b16 %v2319, %v2318
        %v2334 = vpack.c.b16 %v2321, %v2320
        %v2335 = vpack.c.b16 %v2323, %v2322
        %v2336 = vpack.c.b16 %v2325, %v2324
        %v2337 = vpack.c.b16 %v2327, %v2326
        %v2338 = vpack.c.b16 %v2329, %v2328
        %v2339 = vpack.c.b16 %v2331, %v2330
        %2348 = vmatprep.subr.bf16.mxu0 0
        %2349 = vmatpush1.bf16.msra.mxu0 %v2332
        %2350 = vmatprep.subr.bf16.mxu0 0
        %2351 = vmatpush1.bf16.msra.mxu0 %v2333
        %2352 = vmatprep.subr.bf16.mxu0 0
        %2353 = vmatpush1.bf16.msra.mxu0 %v2334
        %2354 = vmatprep.subr.bf16.mxu0 0
        %2355 = vmatpush1.bf16.msra.mxu0 %v2335
        %2356 = vmatprep.subr.bf16.mxu0 0
        %2357 = vmatpush1.bf16.msra.mxu0 %v2336
        %2358 = vmatprep.subr.bf16.mxu0 0
        %2359 = vmatpush1.bf16.msra.mxu0 %v2337
        %2360 = vmatprep.subr.bf16.mxu0 0
        %2361 = vmatpush1.bf16.msra.mxu0 %v2338
        %2362 = vmatprep.subr.bf16.mxu0 0
        %2363 = vmatpush1.bf16.msra.mxu0 %v2339
        %2364 = vmatprep.subr.bf16.mxu0 0
        %2365 = vmatpush1.bf16.msra.mxu0 0
        %2366 = vmatprep.subr.bf16.mxu0 0
        %2367 = vmatpush1.bf16.msra.mxu0 0
        %2368 = vmatprep.subr.bf16.mxu0 0
        %2369 = vmatpush1.bf16.msra.mxu0 0
        %2370 = vmatprep.subr.bf16.mxu0 0
        %2371 = vmatpush1.bf16.msra.mxu0 0
        %2372 = vmatprep.subr.bf16.mxu0 0
        %2373 = vmatpush1.bf16.msra.mxu0 0
        %2374 = vmatprep.subr.bf16.mxu0 0
        %2375 = vmatpush1.bf16.msra.mxu0 0
        %2376 = vmatprep.subr.bf16.mxu0 0
        %2377 = vmatpush1.bf16.msra.mxu0 0
        %2378 = vmatprep.subr.bf16.mxu0 0
        %2379 = vmatpush1.bf16.msra.mxu0 0
        %2380 = vmatprep.mubr.bf16.mxu0 0
        %2381 = vmatmul.mubr.bf16.gmra.mrb[0].mxu0 %v2283
        %v2382 = vpop.f32.mrb[0].mxu0
        %v2383 = vadd.f32 0.0, %v2382
        %v2384 = vpop.f32.mrb[0].mxu0
        %v2385 = vpop.f32.mrb[0].mxu0
        %v2386 = vpop.f32.mrb[0].mxu0
        %2387 = vdwg.mxu0
        %v2388 = vstv %s605
        %v2389 = vmul.f32 %v2383, %v2388
        %v2390 = vld [vmem:[#allocation4] sm:$0xff]
        %2391 = vmax.xlane.f32.xlu0 %v2389
        %v2392 = vpop.xlane.xlu0 %2391
        %v2393 = vmax.f32 %v2390, %v2392
        %v2394 = vsub.f32 %v2390, %v2393
        %v2395 = vmul.f32 %v2394, 1.442695
        %v2396 = vpow.pop %v2395
        %v2397 = vld [vmem:[#allocation5] sm:$0xff]
        %v2398 = vmul.f32 %v2396, %v2397
        %2400 = vset.pattern.permute.xlu0 0
        %2401 = vperm.xlu0 %2400, %v2393
        %v2402 = vpop.permute.xlu0 %2401
        %v2404 = vsub.f32 %v2389, %v2402
        %v2405 = vmul.f32 %v2404, 1.442695
        %v2406 = vpow.pop %v2405
        %2407 = vadd.xlane.f32.xlu0 %v2406
        %v2408 = vpop.xlane.xlu0 %2407
        %v2409 = vadd.f32 %v2398, %v2408
        %vm2410 = vcmask 7168
        %2411 = vst.msk [vmem:[#allocation5] sm:$0xff] %vm2410, %v2409
        %2412 = vst.msk [vmem:[#allocation4] sm:$0xff] %vm2410, %v2393
        %v2413 = vld [vmem:[#allocation6] sm:$0xff]
        %v2414 = vld [vmem:[#allocation3] sm:$0xff]
        %2416 = vset.pattern.permute.xlu0 0
        %2417 = vperm.xlu0 %2416, %v2414
        %v2418 = vpop.permute.xlu0 %2417
        %vm2420 = vcmp.gt.f32.partialorder %v2389, %v2418
        %v2421 = vsel %vm2420, 1, 0
        %v2422 = vcvt.s32.f32 %v2421
        %2423 = vadd.xlane.f32.xlu0 %v2422
        %v2424 = vpop.xlane.xlu0 %2423
        %v2425 = vadd.f32 %v2413, %v2424
        %2426 = vst.msk [vmem:[#allocation6] sm:$0xff] %vm2410, %v2425
        %p2427 = scmp.eq.s32.totalorder %s31, 3
        // Predicated region
        $region114: #{moco_v2_forward.1} parent=104 // pred_check
          %p2428 = pneg %p2427
        $region115: #{moco_v2_forward.1} parent=104 // pred_check_branch
          %2430 = sbr.rel (%p2428) target = $region117
        $region116: #{moco_v2_forward.1} parent=104 // pred_region
          %v2431 = vld [vmem:[#allocation4] sm:$0xff]
          %v2432 = vld [vmem:[#allocation5] sm:$0xff]
          %v2433 = vlog2.pop %v2432
          %v2434 = vmul.f32 %v2433, 0.6931472
          %v2435 = vadd.f32 %v2431, %v2434
          %v2436 = vld [vmem:[#allocation3] sm:$0xff]
          %v2437 = vsub.f32 %v2435, %v2436
          %v2438 = vlaneseq
          %v2439 = vand.u32 %v2438, 127
          %vm2440 = vcmp.eq.s32.totalorder %v2439, 0
          %2442 = vset.pattern.permute.xlu0 0
          %2443 = vperm.xlu0 %2442, %v2437
          %v2444 = vpop.permute.xlu0 %2443
          %v2446 = vsel %vm2440, %v2444, 0.0
          %vm2447 = vcmp.eq.s32.totalorder %v2439, 1
          %v2448 = vld [vmem:[#allocation6] sm:$0xff]
          %2450 = vset.pattern.permute.xlu0 0
          %2451 = vperm.xlu0 %2450, %v2448
          %v2452 = vpop.permute.xlu0 %2451
          %v2454 = vsel %vm2447, %v2452, 0.0
          %v2455 = vadd.f32 %v2446, %v2454
          %2456 = vst [vmem:[%s603] sm:$0xff] %v2455
        $region117: #{moco_v2_forward.1} parent=104 // pred_fallthru
          _
        %p2457 = scmp.lt.s32.totalorder %s30, 0
        %s2458 = scalar_select %p2457, %s30, 0
        %s2459 = smul.addr %s2458, 8
        %s2460 = scalar_lea.vmem %s12, %s2459
        %p2461 = scmp.lt.s32.totalorder %s30, 0
        %s2462 = scalar_select %p2461, %s30, 0
        %s2463 = smul.addr %s2462, 8
        %s2464 = scalar_lea.vmem %s13, %s2463
        // Predicated region
        $region118: #{moco_v2_forward.1} parent=104 // pred_check
          %p2465 = pneg %p323
        $region119: #{moco_v2_forward.1} parent=104 // pred_check_branch
          %2467 = sbr.rel (%p2465) target = $region121
        $region120: #{moco_v2_forward.1} parent=104 // pred_region
          _
        $region121: #{moco_v2_forward.1} parent=104 // pred_fallthru
          _
        // Predicated region
        $region122: #{moco_v2_forward.1} parent=104 // pred_check
          %p2468 = pneg %p349
        $region123: #{moco_v2_forward.1} parent=104 // pred_check_branch
          %2470 = sbr.rel (%p2468) target = $region125
        $region124: #{moco_v2_forward.1} parent=104 // pred_region
          _
        $region125: #{moco_v2_forward.1} parent=104 // pred_fallthru
          _
        // Predicated region
        $region126: #{moco_v2_forward.1} parent=104 // pred_check
          %p2471 = pneg %p323
        $region127: #{moco_v2_forward.1} parent=104 // pred_check_branch
          %2473 = sbr.rel (%p2471) target = $region129
        $region128: #{moco_v2_forward.1} parent=104 // pred_region
          %p2474 = scmp.lt.s32.totalorder %s30, 0
          %s2475 = scalar_select %p2474, %s30, 0
          %s2476 = smul.addr %s2475, 8
          %s2477 = scalar_lea.vmem %s12, %s2476
        $region129: #{moco_v2_forward.1} parent=104 // pred_fallthru
          _
        // Predicated region
        $region130: #{moco_v2_forward.1} parent=104 // pred_check
          %p2478 = pneg %p349
        $region131: #{moco_v2_forward.1} parent=104 // pred_check_branch
          %2480 = sbr.rel (%p2478) target = $region133
        $region132: #{moco_v2_forward.1} parent=104 // pred_region
          %p2481 = scmp.lt.s32.totalorder %s30, 0
          %s2482 = scalar_select %p2481, %s30, 0
          %s2483 = smul.addr %s2482, 8
          %s2484 = scalar_lea.vmem %s13, %s2483
        $region133: #{moco_v2_forward.1} parent=104 // pred_fallthru
          _
      $region105: #{moco_v2_forward.1} parent=5 // pred_fallthru
        _
      %p2485 = scmp.le.s32.totalorder 2, %s21
      // Predicated region
      $region134: #{moco_v2_forward.1} parent=5 // pred_check
        %p2486 = pneg %p2485
      $region135: #{moco_v2_forward.1} parent=5 // pred_check_branch
        %2488 = sbr.rel (%p2486) target = $region137
      $region136: #{moco_v2_forward.1} parent=5 // pred_region
        %s2489 = ssub.s32 %s21, 2
      $region137: #{moco_v2_forward.1} parent=5 // pred_fallthru
        _
    $region6: #{moco_v2_forward.1} parent=1 // loop_footer
      %s25 = sadd.s32 1, %s21
    $region7: #{moco_v2_forward.1} parent=1 // loop_footer_branch
      %20 = sbr.rel target = $region3
    $region8: #{moco_v2_forward.1} parent=1 // loop_exit
      _

</llo_original>
